<compile_context>
chip_gen: v6e
topology: v6e:2x2x1
jax: 0.10.0
libtpu: 0.0.40
codegen_flags: <defaults>
</compile_context>

<pallas_src>
import jax
import jax.numpy as jnp
from jax.experimental import pallas as pl
from jax.experimental.pallas import tpu as pltpu

ROW_TILE = 128  # pad node count to a multiple of the MXU row width


# ------------------------------ kernel ---------------------------------------

def _full_spec(shape):
    # Single-block spec: the whole (padded) array is one VMEM-resident tile.
    return pl.BlockSpec(shape, lambda i: tuple(0 for _ in shape))


def _make_fused_kernel(num_hidden, use_bf16):
    mm_dtype = jnp.bfloat16 if use_bf16 else jnp.float32

    def dot(a, b):
        return jnp.dot(a.astype(mm_dtype), b.astype(mm_dtype),
                       preferred_element_type=jnp.float32)

    def kernel(*refs):
        it = iter(refs)
        adj = next(it)[...]          # (Np, Np) row-normalized adjacency
        x = next(it)[...]            # (Np, in_c)
        feat = next(it)[...]         # (Np, feat_dim)
        hidden = []
        for _ in range(num_hidden):  # (wl, wr, scale, shift) per hidden layer
            hidden.append(tuple(next(it)[...] for _ in range(4)))
        feat_w = next(it)[...]
        feat_b = next(it)[...]
        wl_last = next(it)[...]      # (2H, out_c), kept concatenated
        wr_last = next(it)[...]
        b_last = next(it)[...]
        o_ref = next(it)

        h = x
        for wl, wr, scale, shift in hidden:
            agg = dot(adj, h)                       # mean aggregation of neighbors
            z = dot(agg, wl) + dot(h, wr)           # SAGEConv (bias folded into shift)
            z = z * scale + shift                   # eval-mode BatchNorm1d
            h = jnp.maximum(z, 0.0)                 # ReLU (dropout = identity in eval)

        f = dot(feat, feat_w) + feat_b              # h1_feat linear branch
        hc = jnp.concatenate([h, f], axis=-1)       # torch.cat([x, add_feat], -1), in VMEM
        agg = dot(adj, hc)
        z = dot(agg, wl_last) + dot(hc, wr_last) + b_last

        m = jnp.max(z, axis=-1, keepdims=True)      # log_softmax(dim=-1)
        s = z - m
        lse = jnp.log(jnp.sum(jnp.exp(s), axis=-1, keepdims=True))
        o_ref[...] = s - lse

    return kernel


# ------------------------------ wrapper --------------------------------------

def sage_w_feat_forward(params, x, adj_norm, add_feat, use_bf16=False):
    n, in_c = x.shape
    feat_dim = add_feat.shape[1]
    out_c = params["wl_last"].shape[1]
    num_hidden = len(params["layers"])

    # Pad node rows to a multiple of the MXU row width; padded adjacency
    # rows/cols are zero so padded nodes never influence real nodes.
    n_pad = pl.cdiv(n, ROW_TILE) * ROW_TILE
    pad = n_pad - n
    adj_p = jnp.pad(adj_norm, ((0, pad), (0, pad)))
    x_p = jnp.pad(x, ((0, pad), (0, 0)))
    feat_p = jnp.pad(add_feat, ((0, pad), (0, 0)))

    ops = [adj_p, x_p, feat_p]
    for layer in params["layers"]:
        scale = layer["bn_scale"]
        # Fold the SAGEConv bias into the BatchNorm affine (numerically
        # equivalent): (z + b) * scale + shift == z * scale + (shift + b*scale)
        shift = layer["bn_shift"] + layer["b"] * layer["bn_scale"]
        ops.extend([layer["wl"], layer["wr"], scale, shift])
    ops.extend([params["feat_w"], params["feat_b"],
                params["wl_last"], params["wr_last"], params["b_last"]])

    specs = [_full_spec(a.shape) for a in ops]

    # Explicit VMEM budget from actual operand/output sizes (+ headroom for
    # in-kernel temporaries), instead of relying on the scoped default.
    total_bytes = sum(int(a.size) * a.dtype.itemsize for a in ops)
    total_bytes += n_pad * out_c * 4
    vmem_limit = int(2 * total_bytes + (8 << 20))

    kernel = _make_fused_kernel(num_hidden, use_bf16)
    out = pl.pallas_call(
        kernel,
        out_shape=jax.ShapeDtypeStruct((n_pad, out_c), jnp.float32),
        grid=(1,),
        in_specs=specs,
        out_specs=_full_spec((n_pad, out_c)),
        compiler_params=pltpu.CompilerParams(
            dimension_semantics=("arbitrary",),
            vmem_limit_bytes=vmem_limit),
    )(*ops)
    return out[:n]


# ------------------------------ params ---------------------------------------

def init_params(key, in_channels, hidden, out_channels, num_layers, feat_dim):
    keys = iter(jax.random.split(key, 64))

    def lin_w(k, din, dout):
        s = din ** -0.5
        return jax.random.uniform(k, (din, dout), jnp.float32, -s, s)

    def lin_b(k, din, dout):
        s = din ** -0.5
        return jax.random.uniform(k, (1, dout), jnp.float32, -s, s)

    eps = 1e-5
    layers = []
    dims = [in_channels] + [hidden] * (num_layers - 1)
    for li in range(num_layers - 1):
        din, dout = dims[li], dims[li + 1]
        wl = lin_w(next(keys), din, dout)            # SAGEConv.lin_l (has bias)
        wr = lin_w(next(keys), din, dout)            # SAGEConv.lin_r (no bias)
        b = lin_b(next(keys), din, dout)
        gamma = jax.random.uniform(next(keys), (1, dout), jnp.float32, 0.5, 1.5)
        beta = 0.1 * jax.random.normal(next(keys), (1, dout), jnp.float32)
        r_mean = 0.1 * jax.random.normal(next(keys), (1, dout), jnp.float32)
        r_var = jax.random.uniform(next(keys), (1, dout), jnp.float32, 0.5, 1.5)
        bn_scale = gamma / jnp.sqrt(r_var + eps)
        bn_shift = beta - r_mean * bn_scale
        layers.append(dict(wl=wl, wr=wr, b=b,
                           bn_scale=bn_scale, bn_shift=bn_shift))

    feat_w = lin_w(next(keys), feat_dim, hidden)      # h1_feat
    feat_b = lin_b(next(keys), feat_dim, hidden)

    din_last = 2 * hidden
    wl_last = lin_w(next(keys), din_last, out_channels)
    wr_last = lin_w(next(keys), din_last, out_channels)
    b_last = lin_b(next(keys), din_last, out_channels)

    return dict(layers=layers, feat_w=feat_w, feat_b=feat_b,
                wl_last=wl_last, wr_last=wr_last, b_last=b_last)


def reference_forward(params, x, adj_norm, add_feat):
    # Pure-JAX reference mirroring the PyTorch forward (eval mode).
    h = x
    for layer in params["layers"]:
        agg = adj_norm @ h
        z = agg @ layer["wl"] + h @ layer["wr"] + layer["b"]
        z = z * layer["bn_scale"] + layer["bn_shift"]
        h = jnp.maximum(z, 0.0)
    f = add_feat @ params["feat_w"] + params["feat_b"]
    xc = jnp.concatenate([h, f], axis=-1)
    agg = adj_norm @ xc
    z = agg @ params["wl_last"] + xc @ params["wr_last"] + params["b_last"]
    return jax.nn.log_softmax(z, axis=-1)


# ------------------------------ main ------------------------------------------

if __name__ == "__main__":
    N, IN_C, HID, OUT_C, NUM_LAYERS, FEAT_D = 64, 32, 32, 8, 3, 16

    key = jax.random.PRNGKey(0)
    k_x, k_adj, k_feat, k_params = jax.random.split(key, 4)

    x = jax.random.normal(k_x, (N, IN_C), jnp.float32)
    add_feat = jax.random.normal(k_feat, (N, FEAT_D), jnp.float32)

    # Dense adjacency, row-normalized -> mean aggregation of neighbors.
    a = (jax.random.uniform(k_adj, (N, N)) < 0.25).astype(jnp.float32)
    a = jnp.maximum(a, a.T)
    deg = jnp.sum(a, axis=1, keepdims=True)
    adj_norm = a / jnp.maximum(deg, 1.0)

    params = init_params(k_params, IN_C, HID, OUT_C, NUM_LAYERS, FEAT_D)

    out = jax.jit(sage_w_feat_forward)(params, x, adj_norm, add_feat)
    out = jax.block_until_ready(out)

    ref = reference_forward(params, x, adj_norm, add_feat)
    assert out.shape == (N, OUT_C)
    err = float(jnp.max(jnp.abs(out - ref)))
    assert jnp.allclose(out, ref, atol=1e-4, rtol=1e-4), f"max abs err {err}"

    print("KERNEL_OK")
</pallas_src>

<mosaic_0001>
module attributes {stable_mosaic.version = 11 : i64} {
  func.func @kernel(%arg0: i32, %arg1: memref<128x128xf32, #tpu.memory_space<vmem>>, %arg2: memref<128x32xf32, #tpu.memory_space<vmem>>, %arg3: memref<128x16xf32, #tpu.memory_space<vmem>>, %arg4: memref<32x32xf32, #tpu.memory_space<vmem>>, %arg5: memref<32x32xf32, #tpu.memory_space<vmem>>, %arg6: memref<1x32xf32, #tpu.memory_space<vmem>>, %arg7: memref<1x32xf32, #tpu.memory_space<vmem>>, %arg8: memref<32x32xf32, #tpu.memory_space<vmem>>, %arg9: memref<32x32xf32, #tpu.memory_space<vmem>>, %arg10: memref<1x32xf32, #tpu.memory_space<vmem>>, %arg11: memref<1x32xf32, #tpu.memory_space<vmem>>, %arg12: memref<16x32xf32, #tpu.memory_space<vmem>>, %arg13: memref<1x32xf32, #tpu.memory_space<vmem>>, %arg14: memref<64x8xf32, #tpu.memory_space<vmem>>, %arg15: memref<64x8xf32, #tpu.memory_space<vmem>>, %arg16: memref<1x8xf32, #tpu.memory_space<vmem>>, %arg17: memref<128x8xf32, #tpu.memory_space<vmem>>) attributes {dimension_semantics = [#tpu.dimension_semantics<arbitrary>], iteration_bounds = array<i64: 1>, scalar_prefetch = 0 : i64, scratch_operands = 0 : i64, tpu.core_type = #tpu.core_type<tc>, window_params = [{pipeline_mode = #tpu.pipeline_mode<synchronous>, transform_indices = @transform_0, window_bounds = array<i64: 128, 128>}, {pipeline_mode = #tpu.pipeline_mode<synchronous>, transform_indices = @transform_1, window_bounds = array<i64: 128, 32>}, {pipeline_mode = #tpu.pipeline_mode<synchronous>, transform_indices = @transform_2, window_bounds = array<i64: 128, 16>}, {pipeline_mode = #tpu.pipeline_mode<synchronous>, transform_indices = @transform_3, window_bounds = array<i64: 32, 32>}, {pipeline_mode = #tpu.pipeline_mode<synchronous>, transform_indices = @transform_4, window_bounds = array<i64: 32, 32>}, {pipeline_mode = #tpu.pipeline_mode<synchronous>, transform_indices = @transform_5, window_bounds = array<i64: 1, 32>}, {pipeline_mode = #tpu.pipeline_mode<synchronous>, transform_indices = @transform_6, window_bounds = array<i64: 1, 32>}, {pipeline_mode = #tpu.pipeline_mode<synchronous>, transform_indices = @transform_7, window_bounds = array<i64: 32, 32>}, {pipeline_mode = #tpu.pipeline_mode<synchronous>, transform_indices = @transform_8, window_bounds = array<i64: 32, 32>}, {pipeline_mode = #tpu.pipeline_mode<synchronous>, transform_indices = @transform_9, window_bounds = array<i64: 1, 32>}, {pipeline_mode = #tpu.pipeline_mode<synchronous>, transform_indices = @transform_10, window_bounds = array<i64: 1, 32>}, {pipeline_mode = #tpu.pipeline_mode<synchronous>, transform_indices = @transform_11, window_bounds = array<i64: 16, 32>}, {pipeline_mode = #tpu.pipeline_mode<synchronous>, transform_indices = @transform_12, window_bounds = array<i64: 1, 32>}, {pipeline_mode = #tpu.pipeline_mode<synchronous>, transform_indices = @transform_13, window_bounds = array<i64: 64, 8>}, {pipeline_mode = #tpu.pipeline_mode<synchronous>, transform_indices = @transform_14, window_bounds = array<i64: 64, 8>}, {pipeline_mode = #tpu.pipeline_mode<synchronous>, transform_indices = @transform_15, window_bounds = array<i64: 1, 8>}, {pipeline_mode = #tpu.pipeline_mode<synchronous>, transform_indices = @transform_16, window_bounds = array<i64: 128, 8>}]} {
    %c0 = arith.constant 0 : index
    %c0_0 = arith.constant 0 : index
    %0 = vector.load %arg1[%c0, %c0_0] : memref<128x128xf32, #tpu.memory_space<vmem>>, vector<128x128xf32>
    %c0_1 = arith.constant 0 : index
    %c0_2 = arith.constant 0 : index
    %1 = vector.load %arg2[%c0_1, %c0_2] : memref<128x32xf32, #tpu.memory_space<vmem>>, vector<128x32xf32>
    %c0_3 = arith.constant 0 : index
    %c0_4 = arith.constant 0 : index
    %2 = vector.load %arg3[%c0_3, %c0_4] : memref<128x16xf32, #tpu.memory_space<vmem>>, vector<128x16xf32>
    %c0_5 = arith.constant 0 : index
    %c0_6 = arith.constant 0 : index
    %3 = vector.load %arg4[%c0_5, %c0_6] : memref<32x32xf32, #tpu.memory_space<vmem>>, vector<32x32xf32>
    %c0_7 = arith.constant 0 : index
    %c0_8 = arith.constant 0 : index
    %4 = vector.load %arg5[%c0_7, %c0_8] : memref<32x32xf32, #tpu.memory_space<vmem>>, vector<32x32xf32>
    %c0_9 = arith.constant 0 : index
    %c0_10 = arith.constant 0 : index
    %5 = vector.load %arg6[%c0_9, %c0_10] : memref<1x32xf32, #tpu.memory_space<vmem>>, vector<1x32xf32>
    %c0_11 = arith.constant 0 : index
    %c0_12 = arith.constant 0 : index
    %6 = vector.load %arg7[%c0_11, %c0_12] : memref<1x32xf32, #tpu.memory_space<vmem>>, vector<1x32xf32>
    %c0_13 = arith.constant 0 : index
    %c0_14 = arith.constant 0 : index
    %7 = vector.load %arg8[%c0_13, %c0_14] : memref<32x32xf32, #tpu.memory_space<vmem>>, vector<32x32xf32>
    %c0_15 = arith.constant 0 : index
    %c0_16 = arith.constant 0 : index
    %8 = vector.load %arg9[%c0_15, %c0_16] : memref<32x32xf32, #tpu.memory_space<vmem>>, vector<32x32xf32>
    %c0_17 = arith.constant 0 : index
    %c0_18 = arith.constant 0 : index
    %9 = vector.load %arg10[%c0_17, %c0_18] : memref<1x32xf32, #tpu.memory_space<vmem>>, vector<1x32xf32>
    %c0_19 = arith.constant 0 : index
    %c0_20 = arith.constant 0 : index
    %10 = vector.load %arg11[%c0_19, %c0_20] : memref<1x32xf32, #tpu.memory_space<vmem>>, vector<1x32xf32>
    %c0_21 = arith.constant 0 : index
    %c0_22 = arith.constant 0 : index
    %11 = vector.load %arg12[%c0_21, %c0_22] : memref<16x32xf32, #tpu.memory_space<vmem>>, vector<16x32xf32>
    %c0_23 = arith.constant 0 : index
    %c0_24 = arith.constant 0 : index
    %12 = vector.load %arg13[%c0_23, %c0_24] : memref<1x32xf32, #tpu.memory_space<vmem>>, vector<1x32xf32>
    %c0_25 = arith.constant 0 : index
    %c0_26 = arith.constant 0 : index
    %13 = vector.load %arg14[%c0_25, %c0_26] : memref<64x8xf32, #tpu.memory_space<vmem>>, vector<64x8xf32>
    %c0_27 = arith.constant 0 : index
    %c0_28 = arith.constant 0 : index
    %14 = vector.load %arg15[%c0_27, %c0_28] : memref<64x8xf32, #tpu.memory_space<vmem>>, vector<64x8xf32>
    %c0_29 = arith.constant 0 : index
    %c0_30 = arith.constant 0 : index
    %15 = vector.load %arg16[%c0_29, %c0_30] : memref<1x8xf32, #tpu.memory_space<vmem>>, vector<1x8xf32>
    %cst = arith.constant dense<0.000000e+00> : vector<128x32xf32>
    %16 = tpu.matmul %0, %1, %cst {dimension_numbers = #tpu.dot_dimension_numbers<[1], [0], [0], [1], [0, 0, 1, 1], [], []>} : vector<128x128xf32>, vector<128x32xf32>, vector<128x32xf32> -> vector<128x32xf32>
    %cst_31 = arith.constant dense<0.000000e+00> : vector<128x32xf32>
    %17 = tpu.matmul %16, %3, %cst_31 {dimension_numbers = #tpu.dot_dimension_numbers<[1], [0], [0], [1], [0, 0, 1, 1], [], []>} : vector<128x32xf32>, vector<32x32xf32>, vector<128x32xf32> -> vector<128x32xf32>
    %cst_32 = arith.constant dense<0.000000e+00> : vector<128x32xf32>
    %18 = tpu.matmul %1, %4, %cst_32 {dimension_numbers = #tpu.dot_dimension_numbers<[1], [0], [0], [1], [0, 0, 1, 1], [], []>} : vector<128x32xf32>, vector<32x32xf32>, vector<128x32xf32> -> vector<128x32xf32>
    %19 = arith.addf %17, %18 : vector<128x32xf32>
    %20 = vector.broadcast %5 : vector<1x32xf32> to vector<128x32xf32>
    %21 = arith.mulf %19, %20 : vector<128x32xf32>
    %22 = vector.broadcast %6 : vector<1x32xf32> to vector<128x32xf32>
    %23 = arith.addf %21, %22 : vector<128x32xf32>
    %cst_33 = arith.constant 0.000000e+00 : f32
    %24 = vector.broadcast %cst_33 : f32 to vector<128x32xf32>
    %25 = arith.maximumf %23, %24 : vector<128x32xf32>
    %cst_34 = arith.constant dense<0.000000e+00> : vector<128x32xf32>
    %26 = tpu.matmul %0, %25, %cst_34 {dimension_numbers = #tpu.dot_dimension_numbers<[1], [0], [0], [1], [0, 0, 1, 1], [], []>} : vector<128x128xf32>, vector<128x32xf32>, vector<128x32xf32> -> vector<128x32xf32>
    %cst_35 = arith.constant dense<0.000000e+00> : vector<128x32xf32>
    %27 = tpu.matmul %26, %7, %cst_35 {dimension_numbers = #tpu.dot_dimension_numbers<[1], [0], [0], [1], [0, 0, 1, 1], [], []>} : vector<128x32xf32>, vector<32x32xf32>, vector<128x32xf32> -> vector<128x32xf32>
    %cst_36 = arith.constant dense<0.000000e+00> : vector<128x32xf32>
    %28 = tpu.matmul %25, %8, %cst_36 {dimension_numbers = #tpu.dot_dimension_numbers<[1], [0], [0], [1], [0, 0, 1, 1], [], []>} : vector<128x32xf32>, vector<32x32xf32>, vector<128x32xf32> -> vector<128x32xf32>
    %29 = arith.addf %27, %28 : vector<128x32xf32>
    %30 = vector.broadcast %9 : vector<1x32xf32> to vector<128x32xf32>
    %31 = arith.mulf %29, %30 : vector<128x32xf32>
    %32 = vector.broadcast %10 : vector<1x32xf32> to vector<128x32xf32>
    %33 = arith.addf %31, %32 : vector<128x32xf32>
    %cst_37 = arith.constant 0.000000e+00 : f32
    %34 = vector.broadcast %cst_37 : f32 to vector<128x32xf32>
    %35 = arith.maximumf %33, %34 : vector<128x32xf32>
    %cst_38 = arith.constant dense<0.000000e+00> : vector<128x32xf32>
    %36 = tpu.matmul %2, %11, %cst_38 {dimension_numbers = #tpu.dot_dimension_numbers<[1], [0], [0], [1], [0, 0, 1, 1], [], []>} : vector<128x16xf32>, vector<16x32xf32>, vector<128x32xf32> -> vector<128x32xf32>
    %37 = vector.broadcast %12 : vector<1x32xf32> to vector<128x32xf32>
    %38 = arith.addf %36, %37 : vector<128x32xf32>
    %39 = tpu.concatenate %35, %38 in 1 : vector<128x32xf32>, vector<128x32xf32> -> vector<128x64xf32>
    %cst_39 = arith.constant dense<0.000000e+00> : vector<128x64xf32>
    %40 = tpu.matmul %0, %39, %cst_39 {dimension_numbers = #tpu.dot_dimension_numbers<[1], [0], [0], [1], [0, 0, 1, 1], [], []>} : vector<128x128xf32>, vector<128x64xf32>, vector<128x64xf32> -> vector<128x64xf32>
    %cst_40 = arith.constant dense<0.000000e+00> : vector<128x8xf32>
    %41 = tpu.matmul %40, %13, %cst_40 {dimension_numbers = #tpu.dot_dimension_numbers<[1], [0], [0], [1], [0, 0, 1, 1], [], []>} : vector<128x64xf32>, vector<64x8xf32>, vector<128x8xf32> -> vector<128x8xf32>
    %cst_41 = arith.constant dense<0.000000e+00> : vector<128x8xf32>
    %42 = tpu.matmul %39, %14, %cst_41 {dimension_numbers = #tpu.dot_dimension_numbers<[1], [0], [0], [1], [0, 0, 1, 1], [], []>} : vector<128x64xf32>, vector<64x8xf32>, vector<128x8xf32> -> vector<128x8xf32>
    %43 = arith.addf %41, %42 : vector<128x8xf32>
    %44 = vector.broadcast %15 : vector<1x8xf32> to vector<128x8xf32>
    %45 = arith.addf %43, %44 : vector<128x8xf32>
    %cst_42 = arith.constant dense<0xFF800000> : vector<128xf32>
    %46 = vector.multi_reduction <maximumf>, %45, %cst_42 [1] : vector<128x8xf32> to vector<128xf32>
    %47 = vector.shape_cast %46 : vector<128xf32> to vector<128x1xf32>
    %48 = vector.broadcast %47 : vector<128x1xf32> to vector<128x8xf32>
    %49 = arith.subf %45, %48 : vector<128x8xf32>
    %50 = math.exp %49 : vector<128x8xf32>
    %cst_43 = arith.constant dense<0.000000e+00> : vector<128xf32>
    %51 = vector.multi_reduction <add>, %50, %cst_43 [1] : vector<128x8xf32> to vector<128xf32>
    %52 = vector.shape_cast %51 : vector<128xf32> to vector<128x1xf32>
    %53 = math.log %52 : vector<128x1xf32>
    %54 = vector.broadcast %53 : vector<128x1xf32> to vector<128x8xf32>
    %55 = arith.subf %49, %54 : vector<128x8xf32>
    %c0_44 = arith.constant 0 : index
    %c0_45 = arith.constant 0 : index
    %56 = vector.load %arg17[%c0_44, %c0_45] : memref<128x8xf32, #tpu.memory_space<vmem>>, vector<128x8xf32>
    tpu.vector_store %arg17[%c0_44, %c0_45], %55 {strides = array<i32>} : memref<128x8xf32, #tpu.memory_space<vmem>>, vector<128x8xf32>,
    return
  }
  func.func @transform_0(%arg0: i32) -> (i32, i32) {
    %c0_i32 = arith.constant 0 : i32
    %c0_i32_0 = arith.constant 0 : i32
    %c0_i32_1 = arith.constant 0 : i32
    return %c0_i32, %c0_i32_0 : i32, i32
  }
  func.func @transform_1(%arg0: i32) -> (i32, i32) {
    %c0_i32 = arith.constant 0 : i32
    %c0_i32_0 = arith.constant 0 : i32
    %c0_i32_1 = arith.constant 0 : i32
    return %c0_i32, %c0_i32_0 : i32, i32
  }
  func.func @transform_2(%arg0: i32) -> (i32, i32) {
    %c0_i32 = arith.constant 0 : i32
    %c0_i32_0 = arith.constant 0 : i32
    %c0_i32_1 = arith.constant 0 : i32
    return %c0_i32, %c0_i32_0 : i32, i32
  }
  func.func @transform_3(%arg0: i32) -> (i32, i32) {
    %c0_i32 = arith.constant 0 : i32
    %c0_i32_0 = arith.constant 0 : i32
    %c0_i32_1 = arith.constant 0 : i32
    return %c0_i32, %c0_i32_0 : i32, i32
  }
  func.func @transform_4(%arg0: i32) -> (i32, i32) {
    %c0_i32 = arith.constant 0 : i32
    %c0_i32_0 = arith.constant 0 : i32
    %c0_i32_1 = arith.constant 0 : i32
    return %c0_i32, %c0_i32_0 : i32, i32
  }
  func.func @transform_5(%arg0: i32) -> (i32, i32) {
    %c0_i32 = arith.constant 0 : i32
    %c0_i32_0 = arith.constant 0 : i32
    %c0_i32_1 = arith.constant 0 : i32
    return %c0_i32, %c0_i32_0 : i32, i32
  }
  func.func @transform_6(%arg0: i32) -> (i32, i32) {
    %c0_i32 = arith.constant 0 : i32
    %c0_i32_0 = arith.constant 0 : i32
    %c0_i32_1 = arith.constant 0 : i32
    return %c0_i32, %c0_i32_0 : i32, i32
  }
  func.func @transform_7(%arg0: i32) -> (i32, i32) {
    %c0_i32 = arith.constant 0 : i32
    %c0_i32_0 = arith.constant 0 : i32
    %c0_i32_1 = arith.constant 0 : i32
    return %c0_i32, %c0_i32_0 : i32, i32
  }
  func.func @transform_8(%arg0: i32) -> (i32, i32) {
    %c0_i32 = arith.constant 0 : i32
    %c0_i32_0 = arith.constant 0 : i32
    %c0_i32_1 = arith.constant 0 : i32
    return %c0_i32, %c0_i32_0 : i32, i32
  }
  func.func @transform_9(%arg0: i32) -> (i32, i32) {
    %c0_i32 = arith.constant 0 : i32
    %c0_i32_0 = arith.constant 0 : i32
    %c0_i32_1 = arith.constant 0 : i32
    return %c0_i32, %c0_i32_0 : i32, i32
  }
  func.func @transform_10(%arg0: i32) -> (i32, i32) {
    %c0_i32 = arith.constant 0 : i32
    %c0_i32_0 = arith.constant 0 : i32
    %c0_i32_1 = arith.constant 0 : i32
    return %c0_i32, %c0_i32_0 : i32, i32
  }
  func.func @transform_11(%arg0: i32) -> (i32, i32) {
    %c0_i32 = arith.constant 0 : i32
    %c0_i32_0 = arith.constant 0 : i32
    %c0_i32_1 = arith.constant 0 : i32
    return %c0_i32, %c0_i32_0 : i32, i32
  }
  func.func @transform_12(%arg0: i32) -> (i32, i32) {
    %c0_i32 = arith.constant 0 : i32
    %c0_i32_0 = arith.constant 0 : i32
    %c0_i32_1 = arith.constant 0 : i32
    return %c0_i32, %c0_i32_0 : i32, i32
  }
  func.func @transform_13(%arg0: i32) -> (i32, i32) {
    %c0_i32 = arith.constant 0 : i32
    %c0_i32_0 = arith.constant 0 : i32
    %c0_i32_1 = arith.constant 0 : i32
    return %c0_i32, %c0_i32_0 : i32, i32
  }
  func.func @transform_14(%arg0: i32) -> (i32, i32) {
    %c0_i32 = arith.constant 0 : i32
    %c0_i32_0 = arith.constant 0 : i32
    %c0_i32_1 = arith.constant 0 : i32
    return %c0_i32, %c0_i32_0 : i32, i32
  }
  func.func @transform_15(%arg0: i32) -> (i32, i32) {
    %c0_i32 = arith.constant 0 : i32
    %c0_i32_0 = arith.constant 0 : i32
    %c0_i32_1 = arith.constant 0 : i32
    return %c0_i32, %c0_i32_0 : i32, i32
  }
  func.func @transform_16(%arg0: i32) -> (i32, i32) {
    %c0_i32 = arith.constant 0 : i32
    %c0_i32_0 = arith.constant 0 : i32
    %c0_i32_1 = arith.constant 0 : i32
    return %c0_i32, %c0_i32_0 : i32, i32
  }
}

</mosaic_0001>

<llo_original>
// kernel: sage_w_feat_forward.1
$region0: #{sage_w_feat_forward.1}
  #allocation0 [shape = 'u32[]', space=smem, size = 0x4, offset = 0x4, fixed_abs, tag = 'smem constant byte address 0x4 - core index']
  #allocation1 [shape = 'u32[144,128]{1,0:T(1,128)}', space=vmem, size = 0x12000, scoped, tag = 'internal scratch']
  %s0 = inlined_call_operand.vmem [shape: f32[128,128], index: 0, kind: input, shape index: {}]
  %s1 = inlined_call_operand.vmem [shape: f32[128,32], index: 1, kind: input, shape index: {}]
  %s2 = inlined_call_operand.vmem [shape: f32[128,16], index: 2, kind: input, shape index: {}]
  %s3 = inlined_call_operand.vmem [shape: f32[32,32], index: 3, kind: input, shape index: {}]
  %s4 = inlined_call_operand.vmem [shape: f32[32,32], index: 4, kind: input, shape index: {}]
  %s5 = inlined_call_operand.vmem [shape: f32[1,32], index: 5, kind: input, shape index: {}]
  %s6 = inlined_call_operand.vmem [shape: f32[1,32], index: 6, kind: input, shape index: {}]
  %s7 = inlined_call_operand.vmem [shape: f32[32,32], index: 7, kind: input, shape index: {}]
  %s8 = inlined_call_operand.vmem [shape: f32[32,32], index: 8, kind: input, shape index: {}]
  %s9 = inlined_call_operand.vmem [shape: f32[1,32], index: 9, kind: input, shape index: {}]
  %s10 = inlined_call_operand.vmem [shape: f32[1,32], index: 10, kind: input, shape index: {}]
  %s11 = inlined_call_operand.vmem [shape: f32[16,32], index: 11, kind: input, shape index: {}]
  %s12 = inlined_call_operand.vmem [shape: f32[1,32], index: 12, kind: input, shape index: {}]
  %s13 = inlined_call_operand.vmem [shape: f32[64,8], index: 13, kind: input, shape index: {}]
  %s14 = inlined_call_operand.vmem [shape: f32[64,8], index: 14, kind: input, shape index: {}]
  %s15 = inlined_call_operand.vmem [shape: f32[1,8], index: 15, kind: input, shape index: {}]
  %s16 = inlined_call_operand.vmem [shape: f32[128,8], index: 16, kind: output, shape index: {}]
  %s17 = sld [smem:[#allocation0]]
  $region74: #{sage_w_feat_forward.1} parent=0
    _
  %s19 = ssub.s32 1, %s17
  %s20 = scalar_select 0, %s19, %s17
  // Predicated region
  $region2: #{sage_w_feat_forward.1} parent=0 // pred_check
    _
  $region3: #{sage_w_feat_forward.1} parent=0 // pred_check_branch
    %22 = sbr.rel (0) target = $region5
  $region4: #{sage_w_feat_forward.1} parent=0 // pred_region
    _
  $region5: #{sage_w_feat_forward.1} parent=0 // pred_fallthru
    _
  // Predicated region
  $region6: #{sage_w_feat_forward.1} parent=0 // pred_check
    _
  $region7: #{sage_w_feat_forward.1} parent=0 // pred_check_branch
    %24 = sbr.rel (0) target = $region9
  $region8: #{sage_w_feat_forward.1} parent=0 // pred_region
    _
  $region9: #{sage_w_feat_forward.1} parent=0 // pred_fallthru
    _
  // Predicated region
  $region10: #{sage_w_feat_forward.1} parent=0 // pred_check
    _
  $region11: #{sage_w_feat_forward.1} parent=0 // pred_check_branch
    %26 = sbr.rel (0) target = $region13
  $region12: #{sage_w_feat_forward.1} parent=0 // pred_region
    _
  $region13: #{sage_w_feat_forward.1} parent=0 // pred_fallthru
    _
  // Predicated region
  $region14: #{sage_w_feat_forward.1} parent=0 // pred_check
    _
  $region15: #{sage_w_feat_forward.1} parent=0 // pred_check_branch
    %28 = sbr.rel (0) target = $region17
  $region16: #{sage_w_feat_forward.1} parent=0 // pred_region
    _
  $region17: #{sage_w_feat_forward.1} parent=0 // pred_fallthru
    _
  // Predicated region
  $region18: #{sage_w_feat_forward.1} parent=0 // pred_check
    _
  $region19: #{sage_w_feat_forward.1} parent=0 // pred_check_branch
    %30 = sbr.rel (0) target = $region21
  $region20: #{sage_w_feat_forward.1} parent=0 // pred_region
    _
  $region21: #{sage_w_feat_forward.1} parent=0 // pred_fallthru
    _
  // Predicated region
  $region22: #{sage_w_feat_forward.1} parent=0 // pred_check
    _
  $region23: #{sage_w_feat_forward.1} parent=0 // pred_check_branch
    %32 = sbr.rel (0) target = $region25
  $region24: #{sage_w_feat_forward.1} parent=0 // pred_region
    _
  $region25: #{sage_w_feat_forward.1} parent=0 // pred_fallthru
    _
  // Predicated region
  $region26: #{sage_w_feat_forward.1} parent=0 // pred_check
    _
  $region27: #{sage_w_feat_forward.1} parent=0 // pred_check_branch
    %34 = sbr.rel (0) target = $region29
  $region28: #{sage_w_feat_forward.1} parent=0 // pred_region
    _
  $region29: #{sage_w_feat_forward.1} parent=0 // pred_fallthru
    _
  // Predicated region
  $region30: #{sage_w_feat_forward.1} parent=0 // pred_check
    _
  $region31: #{sage_w_feat_forward.1} parent=0 // pred_check_branch
    %36 = sbr.rel (0) target = $region33
  $region32: #{sage_w_feat_forward.1} parent=0 // pred_region
    _
  $region33: #{sage_w_feat_forward.1} parent=0 // pred_fallthru
    _
  // Predicated region
  $region34: #{sage_w_feat_forward.1} parent=0 // pred_check
    _
  $region35: #{sage_w_feat_forward.1} parent=0 // pred_check_branch
    %38 = sbr.rel (0) target = $region37
  $region36: #{sage_w_feat_forward.1} parent=0 // pred_region
    _
  $region37: #{sage_w_feat_forward.1} parent=0 // pred_fallthru
    _
  // Predicated region
  $region38: #{sage_w_feat_forward.1} parent=0 // pred_check
    _
  $region39: #{sage_w_feat_forward.1} parent=0 // pred_check_branch
    %40 = sbr.rel (0) target = $region41
  $region40: #{sage_w_feat_forward.1} parent=0 // pred_region
    _
  $region41: #{sage_w_feat_forward.1} parent=0 // pred_fallthru
    _
  // Predicated region
  $region42: #{sage_w_feat_forward.1} parent=0 // pred_check
    _
  $region43: #{sage_w_feat_forward.1} parent=0 // pred_check_branch
    %42 = sbr.rel (0) target = $region45
  $region44: #{sage_w_feat_forward.1} parent=0 // pred_region
    _
  $region45: #{sage_w_feat_forward.1} parent=0 // pred_fallthru
    _
  // Predicated region
  $region46: #{sage_w_feat_forward.1} parent=0 // pred_check
    _
  $region47: #{sage_w_feat_forward.1} parent=0 // pred_check_branch
    %44 = sbr.rel (0) target = $region49
  $region48: #{sage_w_feat_forward.1} parent=0 // pred_region
    _
  $region49: #{sage_w_feat_forward.1} parent=0 // pred_fallthru
    _
  // Predicated region
  $region50: #{sage_w_feat_forward.1} parent=0 // pred_check
    _
  $region51: #{sage_w_feat_forward.1} parent=0 // pred_check_branch
    %46 = sbr.rel (0) target = $region53
  $region52: #{sage_w_feat_forward.1} parent=0 // pred_region
    _
  $region53: #{sage_w_feat_forward.1} parent=0 // pred_fallthru
    _
  // Predicated region
  $region54: #{sage_w_feat_forward.1} parent=0 // pred_check
    _
  $region55: #{sage_w_feat_forward.1} parent=0 // pred_check_branch
    %48 = sbr.rel (0) target = $region57
  $region56: #{sage_w_feat_forward.1} parent=0 // pred_region
    _
  $region57: #{sage_w_feat_forward.1} parent=0 // pred_fallthru
    _
  // Predicated region
  $region58: #{sage_w_feat_forward.1} parent=0 // pred_check
    _
  $region59: #{sage_w_feat_forward.1} parent=0 // pred_check_branch
    %50 = sbr.rel (0) target = $region61
  $region60: #{sage_w_feat_forward.1} parent=0 // pred_region
    _
  $region61: #{sage_w_feat_forward.1} parent=0 // pred_fallthru
    _
  // Predicated region
  $region62: #{sage_w_feat_forward.1} parent=0 // pred_check
    _
  $region63: #{sage_w_feat_forward.1} parent=0 // pred_check_branch
    %52 = sbr.rel (0) target = $region65
  $region64: #{sage_w_feat_forward.1} parent=0 // pred_region
    _
  $region65: #{sage_w_feat_forward.1} parent=0 // pred_fallthru
    _
  %v53 = vld [vmem:[%s0] sm:$0xff]
  %v54 = vld [vmem:[%s0 + $0x8] sm:$0xff]
  %v55 = vld [vmem:[%s0 + $0x10] sm:$0xff]
  %v56 = vld [vmem:[%s0 + $0x18] sm:$0xff]
  %v57 = vld [vmem:[%s0 + $0x20] sm:$0xff]
  %v58 = vld [vmem:[%s0 + $0x28] sm:$0xff]
  %v59 = vld [vmem:[%s0 + $0x30] sm:$0xff]
  %v60 = vld [vmem:[%s0 + $0x38] sm:$0xff]
  %v61 = vld [vmem:[%s0 + $0x40] sm:$0xff]
  %v62 = vld [vmem:[%s0 + $0x48] sm:$0xff]
  %v63 = vld [vmem:[%s0 + $0x50] sm:$0xff]
  %v64 = vld [vmem:[%s0 + $0x58] sm:$0xff]
  %v65 = vld [vmem:[%s0 + $0x60] sm:$0xff]
  %v66 = vld [vmem:[%s0 + $0x68] sm:$0xff]
  %v67 = vld [vmem:[%s0 + $0x70] sm:$0xff]
  %v68 = vld [vmem:[%s0 + $0x78] sm:$0xff]
  %v69 = vld [vmem:[%s1] sm:$0xff]
  %v70 = vld [vmem:[%s1 + $0x8] sm:$0xff]
  %v71 = vld [vmem:[%s1 + $0x10] sm:$0xff]
  %v72 = vld [vmem:[%s1 + $0x18] sm:$0xff]
  %v73 = vld [vmem:[%s1 + $0x20] sm:$0xff]
  %v74 = vld [vmem:[%s1 + $0x28] sm:$0xff]
  %v75 = vld [vmem:[%s1 + $0x30] sm:$0xff]
  %v76 = vld [vmem:[%s1 + $0x38] sm:$0xff]
  %v77 = vld [vmem:[%s1 + $0x40] sm:$0xff]
  %v78 = vld [vmem:[%s1 + $0x48] sm:$0xff]
  %v79 = vld [vmem:[%s1 + $0x50] sm:$0xff]
  %v80 = vld [vmem:[%s1 + $0x58] sm:$0xff]
  %v81 = vld [vmem:[%s1 + $0x60] sm:$0xff]
  %v82 = vld [vmem:[%s1 + $0x68] sm:$0xff]
  %v83 = vld [vmem:[%s1 + $0x70] sm:$0xff]
  %v84 = vld [vmem:[%s1 + $0x78] sm:$0xff]
  %v85 = vld [vmem:[%s2] sm:$0xff]
  %v86 = vld [vmem:[%s2 + $0x8] sm:$0xff]
  %v87 = vld [vmem:[%s2 + $0x10] sm:$0xff]
  %v88 = vld [vmem:[%s2 + $0x18] sm:$0xff]
  %v89 = vld [vmem:[%s2 + $0x20] sm:$0xff]
  %v90 = vld [vmem:[%s2 + $0x28] sm:$0xff]
  %v91 = vld [vmem:[%s2 + $0x30] sm:$0xff]
  %v92 = vld [vmem:[%s2 + $0x38] sm:$0xff]
  %v93 = vld [vmem:[%s2 + $0x40] sm:$0xff]
  %v94 = vld [vmem:[%s2 + $0x48] sm:$0xff]
  %v95 = vld [vmem:[%s2 + $0x50] sm:$0xff]
  %v96 = vld [vmem:[%s2 + $0x58] sm:$0xff]
  %v97 = vld [vmem:[%s2 + $0x60] sm:$0xff]
  %v98 = vld [vmem:[%s2 + $0x68] sm:$0xff]
  %v99 = vld [vmem:[%s2 + $0x70] sm:$0xff]
  %v100 = vld [vmem:[%s2 + $0x78] sm:$0xff]
  %v101 = vld [vmem:[%s3] sm:$0xff]
  %v102 = vld [vmem:[%s3 + $0x8] sm:$0xff]
  %v103 = vld [vmem:[%s3 + $0x10] sm:$0xff]
  %v104 = vld [vmem:[%s3 + $0x18] sm:$0xff]
  %v105 = vld [vmem:[%s4] sm:$0xff]
  %v106 = vld [vmem:[%s4 + $0x8] sm:$0xff]
  %v107 = vld [vmem:[%s4 + $0x10] sm:$0xff]
  %v108 = vld [vmem:[%s4 + $0x18] sm:$0xff]
  %v109 = vld [vmem:[%s5] sm:$0x1]
  %v110 = vld [vmem:[%s6] sm:$0x1]
  %v111 = vld [vmem:[%s7] sm:$0xff]
  %v112 = vld [vmem:[%s7 + $0x8] sm:$0xff]
  %v113 = vld [vmem:[%s7 + $0x10] sm:$0xff]
  %v114 = vld [vmem:[%s7 + $0x18] sm:$0xff]
  %v115 = vld [vmem:[%s8] sm:$0xff]
  %v116 = vld [vmem:[%s8 + $0x8] sm:$0xff]
  %v117 = vld [vmem:[%s8 + $0x10] sm:$0xff]
  %v118 = vld [vmem:[%s8 + $0x18] sm:$0xff]
  %v119 = vld [vmem:[%s9] sm:$0x1]
  %v120 = vld [vmem:[%s10] sm:$0x1]
  %v121 = vld [vmem:[%s11] sm:$0xff]
  %v122 = vld [vmem:[%s11 + $0x8] sm:$0xff]
  %v123 = vld [vmem:[%s12] sm:$0x1]
  %v124 = vld [vmem:[%s13] sm:$0xff]
  %v125 = vld [vmem:[%s13 + $0x8] sm:$0xff]
  %v126 = vld [vmem:[%s13 + $0x10] sm:$0xff]
  %v127 = vld [vmem:[%s13 + $0x18] sm:$0xff]
  %v128 = vld [vmem:[%s13 + $0x20] sm:$0xff]
  %v129 = vld [vmem:[%s13 + $0x28] sm:$0xff]
  %v130 = vld [vmem:[%s13 + $0x30] sm:$0xff]
  %v131 = vld [vmem:[%s13 + $0x38] sm:$0xff]
  %v132 = vld [vmem:[%s14] sm:$0xff]
  %v133 = vld [vmem:[%s14 + $0x8] sm:$0xff]
  %v134 = vld [vmem:[%s14 + $0x10] sm:$0xff]
  %v135 = vld [vmem:[%s14 + $0x18] sm:$0xff]
  %v136 = vld [vmem:[%s14 + $0x20] sm:$0xff]
  %v137 = vld [vmem:[%s14 + $0x28] sm:$0xff]
  %v138 = vld [vmem:[%s14 + $0x30] sm:$0xff]
  %v139 = vld [vmem:[%s14 + $0x38] sm:$0xff]
  %v140 = vld [vmem:[%s15] sm:$0x1]
  %141 = vmatprep.subr.mxu0 0.0
  %142 = vmatpush1.msra.mxu0 %v84
  %143 = vmatprep.subr.mxu0 0.0
  %144 = vmatpush1.msra.mxu0 %v83
  %145 = vmatprep.subr.mxu0 0.0
  %146 = vmatpush1.msra.mxu0 %v82
  %147 = vmatprep.subr.mxu0 0.0
  %148 = vmatpush1.msra.mxu0 %v81
  %149 = vmatprep.subr.mxu0 0.0
  %150 = vmatpush1.msra.mxu0 %v80
  %151 = vmatprep.subr.mxu0 0.0
  %152 = vmatpush1.msra.mxu0 %v79
  %153 = vmatprep.subr.mxu0 0.0
  %154 = vmatpush1.msra.mxu0 %v78
  %155 = vmatprep.subr.mxu0 0.0
  %156 = vmatpush1.msra.mxu0 %v77
  %157 = vmatprep.subr.mxu0 0.0
  %158 = vmatpush1.msra.mxu0 %v76
  %159 = vmatprep.subr.mxu0 0.0
  %160 = vmatpush1.msra.mxu0 %v75
  %161 = vmatprep.subr.mxu0 0.0
  %162 = vmatpush1.msra.mxu0 %v74
  %163 = vmatprep.subr.mxu0 0.0
  %164 = vmatpush1.msra.mxu0 %v73
  %165 = vmatprep.subr.mxu0 0.0
  %166 = vmatpush1.msra.mxu0 %v72
  %167 = vmatprep.subr.mxu0 0.0
  %168 = vmatpush1.msra.mxu0 %v71
  %169 = vmatprep.subr.mxu0 0.0
  %170 = vmatpush1.msra.mxu0 %v70
  %171 = vmatprep.subr.mxu0 0.0
  %172 = vmatpush1.msra.mxu0 %v69
  %173 = vmatprep.subr.mxu0 0.0
  %174 = vmatpush2.msra.mxu0 0.0
  %175 = vmatprep.subr.mxu0 0.0
  %176 = vmatpush2.msra.mxu0 0.0
  %177 = vmatprep.subr.mxu0 0.0
  %178 = vmatpush2.msra.mxu0 0.0
  %179 = vmatprep.subr.mxu0 0.0
  %180 = vmatpush2.msra.mxu0 0.0
  %181 = vmatprep.subr.mxu0 0.0
  %182 = vmatpush2.msra.mxu0 0.0
  %183 = vmatprep.subr.mxu0 0.0
  %184 = vmatpush2.msra.mxu0 0.0
  %185 = vmatprep.subr.mxu0 0.0
  %186 = vmatpush2.msra.mxu0 0.0
  %187 = vmatprep.subr.mxu0 0.0
  %188 = vmatpush2.msra.mxu0 0.0
  %189 = vmatprep.subr.mxu0 0.0
  %190 = vmatpush2.msra.mxu0 0.0
  %191 = vmatprep.subr.mxu0 0.0
  %192 = vmatpush2.msra.mxu0 0.0
  %193 = vmatprep.subr.mxu0 0.0
  %194 = vmatpush2.msra.mxu0 0.0
  %195 = vmatprep.subr.mxu0 0.0
  %196 = vmatpush2.msra.mxu0 0.0
  %197 = vmatprep.subr.mxu0 0.0
  %198 = vmatpush2.msra.mxu0 0.0
  %199 = vmatprep.subr.mxu0 0.0
  %200 = vmatpush2.msra.mxu0 0.0
  %201 = vmatprep.subr.mxu0 0.0
  %202 = vmatpush2.msra.mxu0 0.0
  %203 = vmatprep.subr.mxu0 0.0
  %204 = vmatpush2.msra.mxu0 0.0
  %205 = vmatprep.mubr.f32.mxu0 0.0
  %206 = vmatmul.mubr.f32.gmra.mxu0 %v53
  %v207 = vpop.f32.mrf.mxu0
  %v208 = vadd.f32 0.0, %v207
  %v209 = vpop.f32.mrf.mxu0
  %210 = vmatprep.mubr.f32.mxu0 0.0
  %211 = vmatmul.mubr.f32.gmra.mxu0 %v54
  %v212 = vpop.f32.mrf.mxu0
  %v213 = vadd.f32 0.0, %v212
  %v214 = vpop.f32.mrf.mxu0
  %215 = vmatprep.mubr.f32.mxu0 0.0
  %216 = vmatmul.mubr.f32.gmra.mxu0 %v55
  %v217 = vpop.f32.mrf.mxu0
  %v218 = vadd.f32 0.0, %v217
  %v219 = vpop.f32.mrf.mxu0
  %220 = vmatprep.mubr.f32.mxu0 0.0
  %221 = vmatmul.mubr.f32.gmra.mxu0 %v56
  %v222 = vpop.f32.mrf.mxu0
  %v223 = vadd.f32 0.0, %v222
  %v224 = vpop.f32.mrf.mxu0
  %225 = vmatprep.mubr.f32.mxu0 0.0
  %226 = vmatmul.mubr.f32.gmra.mxu0 %v57
  %v227 = vpop.f32.mrf.mxu0
  %v228 = vadd.f32 0.0, %v227
  %v229 = vpop.f32.mrf.mxu0
  %230 = vmatprep.mubr.f32.mxu0 0.0
  %231 = vmatmul.mubr.f32.gmra.mxu0 %v58
  %v232 = vpop.f32.mrf.mxu0
  %v233 = vadd.f32 0.0, %v232
  %v234 = vpop.f32.mrf.mxu0
  %235 = vmatprep.mubr.f32.mxu0 0.0
  %236 = vmatmul.mubr.f32.gmra.mxu0 %v59
  %v237 = vpop.f32.mrf.mxu0
  %v238 = vadd.f32 0.0, %v237
  %v239 = vpop.f32.mrf.mxu0
  %240 = vmatprep.mubr.f32.mxu0 0.0
  %241 = vmatmul.mubr.f32.gmra.mxu0 %v60
  %v242 = vpop.f32.mrf.mxu0
  %v243 = vadd.f32 0.0, %v242
  %v244 = vpop.f32.mrf.mxu0
  %245 = vmatprep.mubr.f32.mxu0 0.0
  %246 = vmatmul.mubr.f32.gmra.mxu0 %v61
  %v247 = vpop.f32.mrf.mxu0
  %v248 = vadd.f32 0.0, %v247
  %v249 = vpop.f32.mrf.mxu0
  %250 = vmatprep.mubr.f32.mxu0 0.0
  %251 = vmatmul.mubr.f32.gmra.mxu0 %v62
  %v252 = vpop.f32.mrf.mxu0
  %v253 = vadd.f32 0.0, %v252
  %v254 = vpop.f32.mrf.mxu0
  %255 = vmatprep.mubr.f32.mxu0 0.0
  %256 = vmatmul.mubr.f32.gmra.mxu0 %v63
  %v257 = vpop.f32.mrf.mxu0
  %v258 = vadd.f32 0.0, %v257
  %v259 = vpop.f32.mrf.mxu0
  %260 = vmatprep.mubr.f32.mxu0 0.0
  %261 = vmatmul.mubr.f32.gmra.mxu0 %v64
  %v262 = vpop.f32.mrf.mxu0
  %v263 = vadd.f32 0.0, %v262
  %v264 = vpop.f32.mrf.mxu0
  %265 = vmatprep.mubr.f32.mxu0 0.0
  %266 = vmatmul.mubr.f32.gmra.mxu0 %v65
  %v267 = vpop.f32.mrf.mxu0
  %v268 = vadd.f32 0.0, %v267
  %v269 = vpop.f32.mrf.mxu0
  %270 = vmatprep.mubr.f32.mxu0 0.0
  %271 = vmatmul.mubr.f32.gmra.mxu0 %v66
  %v272 = vpop.f32.mrf.mxu0
  %v273 = vadd.f32 0.0, %v272
  %v274 = vpop.f32.mrf.mxu0
  %275 = vmatprep.mubr.f32.mxu0 0.0
  %276 = vmatmul.mubr.f32.gmra.mxu0 %v67
  %v277 = vpop.f32.mrf.mxu0
  %v278 = vadd.f32 0.0, %v277
  %v279 = vpop.f32.mrf.mxu0
  %280 = vmatprep.mubr.f32.mxu0 0.0
  %281 = vmatmul.mubr.f32.gmra.mxu0 %v68
  %v282 = vpop.f32.mrf.mxu0
  %v283 = vadd.f32 0.0, %v282
  %v284 = vpop.f32.mrf.mxu0
  %285 = vdwg.mxu0
  %vm286 = vcmask 261120
  %v288 = vsel %vm286, %v69, 0
  %v291 = vsel %vm286, %v70, 0
  %v294 = vsel %vm286, %v71, 0
  %v297 = vsel %vm286, %v72, 0
  %v300 = vsel %vm286, %v73, 0
  %v303 = vsel %vm286, %v74, 0
  %v306 = vsel %vm286, %v75, 0
  %v309 = vsel %vm286, %v76, 0
  %v312 = vsel %vm286, %v77, 0
  %v315 = vsel %vm286, %v78, 0
  %v318 = vsel %vm286, %v79, 0
  %v321 = vsel %vm286, %v80, 0
  %v324 = vsel %vm286, %v81, 0
  %v327 = vsel %vm286, %v82, 0
  %v330 = vsel %vm286, %v83, 0
  %v333 = vsel %vm286, %v84, 0
  %335 = vmatprep.subr.mxu0 0.0
  %336 = vmatpush1.msra.mxu0 0.0
  %337 = vmatprep.subr.mxu0 0.0
  %338 = vmatpush1.msra.mxu0 0.0
  %339 = vmatprep.subr.mxu0 0.0
  %340 = vmatpush1.msra.mxu0 0.0
  %341 = vmatprep.subr.mxu0 0.0
  %342 = vmatpush1.msra.mxu0 0.0
  %343 = vmatprep.subr.mxu0 0.0
  %344 = vmatpush1.msra.mxu0 0.0
  %345 = vmatprep.subr.mxu0 0.0
  %346 = vmatpush1.msra.mxu0 0.0
  %347 = vmatprep.subr.mxu0 0.0
  %348 = vmatpush1.msra.mxu0 0.0
  %349 = vmatprep.subr.mxu0 0.0
  %350 = vmatpush1.msra.mxu0 0.0
  %351 = vmatprep.subr.mxu0 0.0
  %352 = vmatpush1.msra.mxu0 0.0
  %353 = vmatprep.subr.mxu0 0.0
  %354 = vmatpush1.msra.mxu0 0.0
  %355 = vmatprep.subr.mxu0 0.0
  %356 = vmatpush1.msra.mxu0 0.0
  %357 = vmatprep.subr.mxu0 0.0
  %358 = vmatpush1.msra.mxu0 0.0
  %359 = vmatprep.subr.mxu0 0.0
  %360 = vmatpush1.msra.mxu0 %v108
  %361 = vmatprep.subr.mxu0 0.0
  %362 = vmatpush1.msra.mxu0 %v107
  %363 = vmatprep.subr.mxu0 0.0
  %364 = vmatpush1.msra.mxu0 %v106
  %365 = vmatprep.subr.mxu0 0.0
  %366 = vmatpush1.msra.mxu0 %v105
  %367 = vmatprep.subr.mxu0 0.0
  %368 = vmatpush2.msra.mxu0 0.0
  %369 = vmatprep.subr.mxu0 0.0
  %370 = vmatpush2.msra.mxu0 0.0
  %371 = vmatprep.subr.mxu0 0.0
  %372 = vmatpush2.msra.mxu0 0.0
  %373 = vmatprep.subr.mxu0 0.0
  %374 = vmatpush2.msra.mxu0 0.0
  %375 = vmatprep.subr.mxu0 0.0
  %376 = vmatpush2.msra.mxu0 0.0
  %377 = vmatprep.subr.mxu0 0.0
  %378 = vmatpush2.msra.mxu0 0.0
  %379 = vmatprep.subr.mxu0 0.0
  %380 = vmatpush2.msra.mxu0 0.0
  %381 = vmatprep.subr.mxu0 0.0
  %382 = vmatpush2.msra.mxu0 0.0
  %383 = vmatprep.subr.mxu0 0.0
  %384 = vmatpush2.msra.mxu0 0.0
  %385 = vmatprep.subr.mxu0 0.0
  %386 = vmatpush2.msra.mxu0 0.0
  %387 = vmatprep.subr.mxu0 0.0
  %388 = vmatpush2.msra.mxu0 0.0
  %389 = vmatprep.subr.mxu0 0.0
  %390 = vmatpush2.msra.mxu0 0.0
  %391 = vmatprep.subr.mxu0 0.0
  %392 = vmatpush2.msra.mxu0 0.0
  %393 = vmatprep.subr.mxu0 0.0
  %394 = vmatpush2.msra.mxu0 0.0
  %395 = vmatprep.subr.mxu0 0.0
  %396 = vmatpush2.msra.mxu0 0.0
  %397 = vmatprep.subr.mxu0 0.0
  %398 = vmatpush2.msra.mxu0 0.0
  %399 = vmatprep.mubr.f32.mxu0 0.0
  %400 = vmatmul.mubr.f32.gmra.mxu0 %v288
  %v401 = vpop.f32.mrf.mxu0
  %v402 = vadd.f32 0.0, %v401
  %v403 = vpop.f32.mrf.mxu0
  %404 = vmatprep.mubr.f32.mxu0 0.0
  %405 = vmatmul.mubr.f32.gmra.mxu0 %v291
  %v406 = vpop.f32.mrf.mxu0
  %v407 = vadd.f32 0.0, %v406
  %v408 = vpop.f32.mrf.mxu0
  %409 = vmatprep.mubr.f32.mxu0 0.0
  %410 = vmatmul.mubr.f32.gmra.mxu0 %v294
  %v411 = vpop.f32.mrf.mxu0
  %v412 = vadd.f32 0.0, %v411
  %v413 = vpop.f32.mrf.mxu0
  %414 = vmatprep.mubr.f32.mxu0 0.0
  %415 = vmatmul.mubr.f32.gmra.mxu0 %v297
  %v416 = vpop.f32.mrf.mxu0
  %v417 = vadd.f32 0.0, %v416
  %v418 = vpop.f32.mrf.mxu0
  %419 = vmatprep.mubr.f32.mxu0 0.0
  %420 = vmatmul.mubr.f32.gmra.mxu0 %v300
  %v421 = vpop.f32.mrf.mxu0
  %v422 = vadd.f32 0.0, %v421
  %v423 = vpop.f32.mrf.mxu0
  %424 = vmatprep.mubr.f32.mxu0 0.0
  %425 = vmatmul.mubr.f32.gmra.mxu0 %v303
  %v426 = vpop.f32.mrf.mxu0
  %v427 = vadd.f32 0.0, %v426
  %v428 = vpop.f32.mrf.mxu0
  %429 = vmatprep.mubr.f32.mxu0 0.0
  %430 = vmatmul.mubr.f32.gmra.mxu0 %v306
  %v431 = vpop.f32.mrf.mxu0
  %v432 = vadd.f32 0.0, %v431
  %v433 = vpop.f32.mrf.mxu0
  %434 = vmatprep.mubr.f32.mxu0 0.0
  %435 = vmatmul.mubr.f32.gmra.mxu0 %v309
  %v436 = vpop.f32.mrf.mxu0
  %v437 = vadd.f32 0.0, %v436
  %v438 = vpop.f32.mrf.mxu0
  %439 = vmatprep.mubr.f32.mxu0 0.0
  %440 = vmatmul.mubr.f32.gmra.mxu0 %v312
  %v441 = vpop.f32.mrf.mxu0
  %v442 = vadd.f32 0.0, %v441
  %v443 = vpop.f32.mrf.mxu0
  %444 = vmatprep.mubr.f32.mxu0 0.0
  %445 = vmatmul.mubr.f32.gmra.mxu0 %v315
  %v446 = vpop.f32.mrf.mxu0
  %v447 = vadd.f32 0.0, %v446
  %v448 = vpop.f32.mrf.mxu0
  %449 = vmatprep.mubr.f32.mxu0 0.0
  %450 = vmatmul.mubr.f32.gmra.mxu0 %v318
  %v451 = vpop.f32.mrf.mxu0
  %v452 = vadd.f32 0.0, %v451
  %v453 = vpop.f32.mrf.mxu0
  %454 = vmatprep.mubr.f32.mxu0 0.0
  %455 = vmatmul.mubr.f32.gmra.mxu0 %v321
  %v456 = vpop.f32.mrf.mxu0
  %v457 = vadd.f32 0.0, %v456
  %v458 = vpop.f32.mrf.mxu0
  %459 = vmatprep.mubr.f32.mxu0 0.0
  %460 = vmatmul.mubr.f32.gmra.mxu0 %v324
  %v461 = vpop.f32.mrf.mxu0
  %v462 = vadd.f32 0.0, %v461
  %v463 = vpop.f32.mrf.mxu0
  %464 = vmatprep.mubr.f32.mxu0 0.0
  %465 = vmatmul.mubr.f32.gmra.mxu0 %v327
  %v466 = vpop.f32.mrf.mxu0
  %v467 = vadd.f32 0.0, %v466
  %v468 = vpop.f32.mrf.mxu0
  %469 = vmatprep.mubr.f32.mxu0 0.0
  %470 = vmatmul.mubr.f32.gmra.mxu0 %v330
  %v471 = vpop.f32.mrf.mxu0
  %v472 = vadd.f32 0.0, %v471
  %v473 = vpop.f32.mrf.mxu0
  %474 = vmatprep.mubr.f32.mxu0 0.0
  %475 = vmatmul.mubr.f32.gmra.mxu0 %v333
  %v476 = vpop.f32.mrf.mxu0
  %v477 = vadd.f32 0.0, %v476
  %v478 = vpop.f32.mrf.mxu0
  %479 = vdwg.mxu0
  %v481 = vsel %vm286, %v208, 0
  %v484 = vsel %vm286, %v213, 0
  %v487 = vsel %vm286, %v218, 0
  %v490 = vsel %vm286, %v223, 0
  %v493 = vsel %vm286, %v228, 0
  %v496 = vsel %vm286, %v233, 0
  %v499 = vsel %vm286, %v238, 0
  %v502 = vsel %vm286, %v243, 0
  %v505 = vsel %vm286, %v248, 0
  %v508 = vsel %vm286, %v253, 0
  %v511 = vsel %vm286, %v258, 0
  %v514 = vsel %vm286, %v263, 0
  %v517 = vsel %vm286, %v268, 0
  %v520 = vsel %vm286, %v273, 0
  %v523 = vsel %vm286, %v278, 0
  %v526 = vsel %vm286, %v283, 0
  %528 = vmatprep.subr.mxu0 0.0
  %529 = vmatpush1.msra.mxu0 0.0
  %530 = vmatprep.subr.mxu0 0.0
  %531 = vmatpush1.msra.mxu0 0.0
  %532 = vmatprep.subr.mxu0 0.0
  %533 = vmatpush1.msra.mxu0 0.0
  %534 = vmatprep.subr.mxu0 0.0
  %535 = vmatpush1.msra.mxu0 0.0
  %536 = vmatprep.subr.mxu0 0.0
  %537 = vmatpush1.msra.mxu0 0.0
  %538 = vmatprep.subr.mxu0 0.0
  %539 = vmatpush1.msra.mxu0 0.0
  %540 = vmatprep.subr.mxu0 0.0
  %541 = vmatpush1.msra.mxu0 0.0
  %542 = vmatprep.subr.mxu0 0.0
  %543 = vmatpush1.msra.mxu0 0.0
  %544 = vmatprep.subr.mxu0 0.0
  %545 = vmatpush1.msra.mxu0 0.0
  %546 = vmatprep.subr.mxu0 0.0
  %547 = vmatpush1.msra.mxu0 0.0
  %548 = vmatprep.subr.mxu0 0.0
  %549 = vmatpush1.msra.mxu0 0.0
  %550 = vmatprep.subr.mxu0 0.0
  %551 = vmatpush1.msra.mxu0 0.0
  %552 = vmatprep.subr.mxu0 0.0
  %553 = vmatpush1.msra.mxu0 %v104
  %554 = vmatprep.subr.mxu0 0.0
  %555 = vmatpush1.msra.mxu0 %v103
  %556 = vmatprep.subr.mxu0 0.0
  %557 = vmatpush1.msra.mxu0 %v102
  %558 = vmatprep.subr.mxu0 0.0
  %559 = vmatpush1.msra.mxu0 %v101
  %560 = vmatprep.subr.mxu0 0.0
  %561 = vmatpush2.msra.mxu0 0.0
  %562 = vmatprep.subr.mxu0 0.0
  %563 = vmatpush2.msra.mxu0 0.0
  %564 = vmatprep.subr.mxu0 0.0
  %565 = vmatpush2.msra.mxu0 0.0
  %566 = vmatprep.subr.mxu0 0.0
  %567 = vmatpush2.msra.mxu0 0.0
  %568 = vmatprep.subr.mxu0 0.0
  %569 = vmatpush2.msra.mxu0 0.0
  %570 = vmatprep.subr.mxu0 0.0
  %571 = vmatpush2.msra.mxu0 0.0
  %572 = vmatprep.subr.mxu0 0.0
  %573 = vmatpush2.msra.mxu0 0.0
  %574 = vmatprep.subr.mxu0 0.0
  %575 = vmatpush2.msra.mxu0 0.0
  %576 = vmatprep.subr.mxu0 0.0
  %577 = vmatpush2.msra.mxu0 0.0
  %578 = vmatprep.subr.mxu0 0.0
  %579 = vmatpush2.msra.mxu0 0.0
  %580 = vmatprep.subr.mxu0 0.0
  %581 = vmatpush2.msra.mxu0 0.0
  %582 = vmatprep.subr.mxu0 0.0
  %583 = vmatpush2.msra.mxu0 0.0
  %584 = vmatprep.subr.mxu0 0.0
  %585 = vmatpush2.msra.mxu0 0.0
  %586 = vmatprep.subr.mxu0 0.0
  %587 = vmatpush2.msra.mxu0 0.0
  %588 = vmatprep.subr.mxu0 0.0
  %589 = vmatpush2.msra.mxu0 0.0
  %590 = vmatprep.subr.mxu0 0.0
  %591 = vmatpush2.msra.mxu0 0.0
  %592 = vmatprep.mubr.f32.mxu0 0.0
  %593 = vmatmul.mubr.f32.gmra.mxu0 %v481
  %v594 = vpop.f32.mrf.mxu0
  %v595 = vadd.f32 %v402, %v594
  %v596 = vpop.f32.mrf.mxu0
  %597 = vmatprep.mubr.f32.mxu0 0.0
  %598 = vmatmul.mubr.f32.gmra.mxu0 %v484
  %v599 = vpop.f32.mrf.mxu0
  %v600 = vadd.f32 %v407, %v599
  %v601 = vpop.f32.mrf.mxu0
  %602 = vmatprep.mubr.f32.mxu0 0.0
  %603 = vmatmul.mubr.f32.gmra.mxu0 %v487
  %v604 = vpop.f32.mrf.mxu0
  %v605 = vadd.f32 %v412, %v604
  %v606 = vpop.f32.mrf.mxu0
  %607 = vmatprep.mubr.f32.mxu0 0.0
  %608 = vmatmul.mubr.f32.gmra.mxu0 %v490
  %v609 = vpop.f32.mrf.mxu0
  %v610 = vadd.f32 %v417, %v609
  %v611 = vpop.f32.mrf.mxu0
  %612 = vmatprep.mubr.f32.mxu0 0.0
  %613 = vmatmul.mubr.f32.gmra.mxu0 %v493
  %v614 = vpop.f32.mrf.mxu0
  %v615 = vadd.f32 %v422, %v614
  %v616 = vpop.f32.mrf.mxu0
  %617 = vmatprep.mubr.f32.mxu0 0.0
  %618 = vmatmul.mubr.f32.gmra.mxu0 %v496
  %v619 = vpop.f32.mrf.mxu0
  %v620 = vadd.f32 %v427, %v619
  %v621 = vpop.f32.mrf.mxu0
  %622 = vmatprep.mubr.f32.mxu0 0.0
  %623 = vmatmul.mubr.f32.gmra.mxu0 %v499
  %v624 = vpop.f32.mrf.mxu0
  %v625 = vadd.f32 %v432, %v624
  %v626 = vpop.f32.mrf.mxu0
  %627 = vmatprep.mubr.f32.mxu0 0.0
  %628 = vmatmul.mubr.f32.gmra.mxu0 %v502
  %v629 = vpop.f32.mrf.mxu0
  %v630 = vadd.f32 %v437, %v629
  %v631 = vpop.f32.mrf.mxu0
  %632 = vmatprep.mubr.f32.mxu0 0.0
  %633 = vmatmul.mubr.f32.gmra.mxu0 %v505
  %v634 = vpop.f32.mrf.mxu0
  %v635 = vadd.f32 %v442, %v634
  %v636 = vpop.f32.mrf.mxu0
  %637 = vmatprep.mubr.f32.mxu0 0.0
  %638 = vmatmul.mubr.f32.gmra.mxu0 %v508
  %v639 = vpop.f32.mrf.mxu0
  %v640 = vadd.f32 %v447, %v639
  %v641 = vpop.f32.mrf.mxu0
  %642 = vmatprep.mubr.f32.mxu0 0.0
  %643 = vmatmul.mubr.f32.gmra.mxu0 %v511
  %v644 = vpop.f32.mrf.mxu0
  %v645 = vadd.f32 %v452, %v644
  %v646 = vpop.f32.mrf.mxu0
  %647 = vmatprep.mubr.f32.mxu0 0.0
  %648 = vmatmul.mubr.f32.gmra.mxu0 %v514
  %v649 = vpop.f32.mrf.mxu0
  %v650 = vadd.f32 %v457, %v649
  %v651 = vpop.f32.mrf.mxu0
  %652 = vmatprep.mubr.f32.mxu0 0.0
  %653 = vmatmul.mubr.f32.gmra.mxu0 %v517
  %v654 = vpop.f32.mrf.mxu0
  %v655 = vadd.f32 %v462, %v654
  %v656 = vpop.f32.mrf.mxu0
  %657 = vmatprep.mubr.f32.mxu0 0.0
  %658 = vmatmul.mubr.f32.gmra.mxu0 %v520
  %v659 = vpop.f32.mrf.mxu0
  %v660 = vadd.f32 %v467, %v659
  %v661 = vpop.f32.mrf.mxu0
  %662 = vmatprep.mubr.f32.mxu0 0.0
  %663 = vmatmul.mubr.f32.gmra.mxu0 %v523
  %v664 = vpop.f32.mrf.mxu0
  %v665 = vadd.f32 %v472, %v664
  %v666 = vpop.f32.mrf.mxu0
  %667 = vmatprep.mubr.f32.mxu0 0.0
  %668 = vmatmul.mubr.f32.gmra.mxu0 %v526
  %v669 = vpop.f32.mrf.mxu0
  %v670 = vadd.f32 %v477, %v669
  %v671 = vpop.f32.mrf.mxu0
  %672 = vdwg.mxu0
  %v674 = vlaneseq
  %v675 = vshrl.u32 %v674, 7
  %v676 = vsub.s32 0, %v675
  %v677 = vrot.slane %v109, %v676
  %v679 = vmul.f32 %v595, %v677
  %v680 = vmul.f32 %v600, %v677
  %v681 = vmul.f32 %v605, %v677
  %v682 = vmul.f32 %v610, %v677
  %v683 = vmul.f32 %v615, %v677
  %v684 = vmul.f32 %v620, %v677
  %v685 = vmul.f32 %v625, %v677
  %v686 = vmul.f32 %v630, %v677
  %v687 = vmul.f32 %v635, %v677
  %v688 = vmul.f32 %v640, %v677
  %v689 = vmul.f32 %v645, %v677
  %v690 = vmul.f32 %v650, %v677
  %v691 = vmul.f32 %v655, %v677
  %v692 = vmul.f32 %v660, %v677
  %v693 = vmul.f32 %v665, %v677
  %v694 = vmul.f32 %v670, %v677
  %v696 = vlaneseq
  %v697 = vshrl.u32 %v696, 7
  %v698 = vsub.s32 0, %v697
  %v699 = vrot.slane %v110, %v698
  %v701 = vadd.f32 %v679, %v699
  %v702 = vadd.f32 %v680, %v699
  %v703 = vadd.f32 %v681, %v699
  %v704 = vadd.f32 %v682, %v699
  %v705 = vadd.f32 %v683, %v699
  %v706 = vadd.f32 %v684, %v699
  %v707 = vadd.f32 %v685, %v699
  %v708 = vadd.f32 %v686, %v699
  %v709 = vadd.f32 %v687, %v699
  %v710 = vadd.f32 %v688, %v699
  %v711 = vadd.f32 %v689, %v699
  %v712 = vadd.f32 %v690, %v699
  %v713 = vadd.f32 %v691, %v699
  %v714 = vadd.f32 %v692, %v699
  %v715 = vadd.f32 %v693, %v699
  %v716 = vadd.f32 %v694, %v699
  %v717 = vmax.f32 %v701, 0.0
  %v718 = vmax.f32 %v702, 0.0
  %v719 = vmax.f32 %v703, 0.0
  %v720 = vmax.f32 %v704, 0.0
  %v721 = vmax.f32 %v705, 0.0
  %v722 = vmax.f32 %v706, 0.0
  %v723 = vmax.f32 %v707, 0.0
  %v724 = vmax.f32 %v708, 0.0
  %v725 = vmax.f32 %v709, 0.0
  %v726 = vmax.f32 %v710, 0.0
  %v727 = vmax.f32 %v711, 0.0
  %v728 = vmax.f32 %v712, 0.0
  %v729 = vmax.f32 %v713, 0.0
  %v730 = vmax.f32 %v714, 0.0
  %v731 = vmax.f32 %v715, 0.0
  %v732 = vmax.f32 %v716, 0.0
  %733 = vmatprep.subr.mxu0 0.0
  %734 = vmatpush1.msra.mxu0 %v732
  %735 = vmatprep.subr.mxu0 0.0
  %736 = vmatpush1.msra.mxu0 %v731
  %737 = vmatprep.subr.mxu0 0.0
  %738 = vmatpush1.msra.mxu0 %v730
  %739 = vmatprep.subr.mxu0 0.0
  %740 = vmatpush1.msra.mxu0 %v729
  %741 = vmatprep.subr.mxu0 0.0
  %742 = vmatpush1.msra.mxu0 %v728
  %743 = vmatprep.subr.mxu0 0.0
  %744 = vmatpush1.msra.mxu0 %v727
  %745 = vmatprep.subr.mxu0 0.0
  %746 = vmatpush1.msra.mxu0 %v726
  %747 = vmatprep.subr.mxu0 0.0
  %748 = vmatpush1.msra.mxu0 %v725
  %749 = vmatprep.subr.mxu0 0.0
  %750 = vmatpush1.msra.mxu0 %v724
  %751 = vmatprep.subr.mxu0 0.0
  %752 = vmatpush1.msra.mxu0 %v723
  %753 = vmatprep.subr.mxu0 0.0
  %754 = vmatpush1.msra.mxu0 %v722
  %755 = vmatprep.subr.mxu0 0.0
  %756 = vmatpush1.msra.mxu0 %v721
  %757 = vmatprep.subr.mxu0 0.0
  %758 = vmatpush1.msra.mxu0 %v720
  %759 = vmatprep.subr.mxu0 0.0
  %760 = vmatpush1.msra.mxu0 %v719
  %761 = vmatprep.subr.mxu0 0.0
  %762 = vmatpush1.msra.mxu0 %v718
  %763 = vmatprep.subr.mxu0 0.0
  %764 = vmatpush1.msra.mxu0 %v717
  %765 = vmatprep.subr.mxu0 0.0
  %766 = vmatpush2.msra.mxu0 0.0
  %767 = vmatprep.subr.mxu0 0.0
  %768 = vmatpush2.msra.mxu0 0.0
  %769 = vmatprep.subr.mxu0 0.0
  %770 = vmatpush2.msra.mxu0 0.0
  %771 = vmatprep.subr.mxu0 0.0
  %772 = vmatpush2.msra.mxu0 0.0
  %773 = vmatprep.subr.mxu0 0.0
  %774 = vmatpush2.msra.mxu0 0.0
  %775 = vmatprep.subr.mxu0 0.0
  %776 = vmatpush2.msra.mxu0 0.0
  %777 = vmatprep.subr.mxu0 0.0
  %778 = vmatpush2.msra.mxu0 0.0
  %779 = vmatprep.subr.mxu0 0.0
  %780 = vmatpush2.msra.mxu0 0.0
  %781 = vmatprep.subr.mxu0 0.0
  %782 = vmatpush2.msra.mxu0 0.0
  %783 = vmatprep.subr.mxu0 0.0
  %784 = vmatpush2.msra.mxu0 0.0
  %785 = vmatprep.subr.mxu0 0.0
  %786 = vmatpush2.msra.mxu0 0.0
  %787 = vmatprep.subr.mxu0 0.0
  %788 = vmatpush2.msra.mxu0 0.0
  %789 = vmatprep.subr.mxu0 0.0
  %790 = vmatpush2.msra.mxu0 0.0
  %791 = vmatprep.subr.mxu0 0.0
  %792 = vmatpush2.msra.mxu0 0.0
  %793 = vmatprep.subr.mxu0 0.0
  %794 = vmatpush2.msra.mxu0 0.0
  %795 = vmatprep.subr.mxu0 0.0
  %796 = vmatpush2.msra.mxu0 0.0
  %797 = vmatprep.mubr.f32.mxu0 0.0
  %798 = vmatmul.mubr.f32.gmra.mxu0 %v53
  %v799 = vpop.f32.mrf.mxu0
  %v800 = vadd.f32 0.0, %v799
  %v801 = vpop.f32.mrf.mxu0
  %802 = vmatprep.mubr.f32.mxu0 0.0
  %803 = vmatmul.mubr.f32.gmra.mxu0 %v54
  %v804 = vpop.f32.mrf.mxu0
  %v805 = vadd.f32 0.0, %v804
  %v806 = vpop.f32.mrf.mxu0
  %807 = vmatprep.mubr.f32.mxu0 0.0
  %808 = vmatmul.mubr.f32.gmra.mxu0 %v55
  %v809 = vpop.f32.mrf.mxu0
  %v810 = vadd.f32 0.0, %v809
  %v811 = vpop.f32.mrf.mxu0
  %812 = vmatprep.mubr.f32.mxu0 0.0
  %813 = vmatmul.mubr.f32.gmra.mxu0 %v56
  %v814 = vpop.f32.mrf.mxu0
  %v815 = vadd.f32 0.0, %v814
  %v816 = vpop.f32.mrf.mxu0
  %817 = vmatprep.mubr.f32.mxu0 0.0
  %818 = vmatmul.mubr.f32.gmra.mxu0 %v57
  %v819 = vpop.f32.mrf.mxu0
  %v820 = vadd.f32 0.0, %v819
  %v821 = vpop.f32.mrf.mxu0
  %822 = vmatprep.mubr.f32.mxu0 0.0
  %823 = vmatmul.mubr.f32.gmra.mxu0 %v58
  %v824 = vpop.f32.mrf.mxu0
  %v825 = vadd.f32 0.0, %v824
  %v826 = vpop.f32.mrf.mxu0
  %827 = vmatprep.mubr.f32.mxu0 0.0
  %828 = vmatmul.mubr.f32.gmra.mxu0 %v59
  %v829 = vpop.f32.mrf.mxu0
  %v830 = vadd.f32 0.0, %v829
  %v831 = vpop.f32.mrf.mxu0
  %832 = vmatprep.mubr.f32.mxu0 0.0
  %833 = vmatmul.mubr.f32.gmra.mxu0 %v60
  %v834 = vpop.f32.mrf.mxu0
  %v835 = vadd.f32 0.0, %v834
  %v836 = vpop.f32.mrf.mxu0
  %837 = vmatprep.mubr.f32.mxu0 0.0
  %838 = vmatmul.mubr.f32.gmra.mxu0 %v61
  %v839 = vpop.f32.mrf.mxu0
  %v840 = vadd.f32 0.0, %v839
  %v841 = vpop.f32.mrf.mxu0
  %842 = vmatprep.mubr.f32.mxu0 0.0
  %843 = vmatmul.mubr.f32.gmra.mxu0 %v62
  %v844 = vpop.f32.mrf.mxu0
  %v845 = vadd.f32 0.0, %v844
  %v846 = vpop.f32.mrf.mxu0
  %847 = vmatprep.mubr.f32.mxu0 0.0
  %848 = vmatmul.mubr.f32.gmra.mxu0 %v63
  %v849 = vpop.f32.mrf.mxu0
  %v850 = vadd.f32 0.0, %v849
  %v851 = vpop.f32.mrf.mxu0
  %852 = vmatprep.mubr.f32.mxu0 0.0
  %853 = vmatmul.mubr.f32.gmra.mxu0 %v64
  %v854 = vpop.f32.mrf.mxu0
  %v855 = vadd.f32 0.0, %v854
  %v856 = vpop.f32.mrf.mxu0
  %857 = vmatprep.mubr.f32.mxu0 0.0
  %858 = vmatmul.mubr.f32.gmra.mxu0 %v65
  %v859 = vpop.f32.mrf.mxu0
  %v860 = vadd.f32 0.0, %v859
  %v861 = vpop.f32.mrf.mxu0
  %862 = vmatprep.mubr.f32.mxu0 0.0
  %863 = vmatmul.mubr.f32.gmra.mxu0 %v66
  %v864 = vpop.f32.mrf.mxu0
  %v865 = vadd.f32 0.0, %v864
  %v866 = vpop.f32.mrf.mxu0
  %867 = vmatprep.mubr.f32.mxu0 0.0
  %868 = vmatmul.mubr.f32.gmra.mxu0 %v67
  %v869 = vpop.f32.mrf.mxu0
  %v870 = vadd.f32 0.0, %v869
  %v871 = vpop.f32.mrf.mxu0
  %872 = vmatprep.mubr.f32.mxu0 0.0
  %873 = vmatmul.mubr.f32.gmra.mxu0 %v68
  %v874 = vpop.f32.mrf.mxu0
  %v875 = vadd.f32 0.0, %v874
  %v876 = vpop.f32.mrf.mxu0
  %877 = vdwg.mxu0
  %v879 = vsel %vm286, %v717, 0
  %v882 = vsel %vm286, %v718, 0
  %v885 = vsel %vm286, %v719, 0
  %v888 = vsel %vm286, %v720, 0
  %v891 = vsel %vm286, %v721, 0
  %v894 = vsel %vm286, %v722, 0
  %v897 = vsel %vm286, %v723, 0
  %v900 = vsel %vm286, %v724, 0
  %v903 = vsel %vm286, %v725, 0
  %v906 = vsel %vm286, %v726, 0
  %v909 = vsel %vm286, %v727, 0
  %v912 = vsel %vm286, %v728, 0
  %v915 = vsel %vm286, %v729, 0
  %v918 = vsel %vm286, %v730, 0
  %v921 = vsel %vm286, %v731, 0
  %v924 = vsel %vm286, %v732, 0
  %926 = vmatprep.subr.mxu0 0.0
  %927 = vmatpush1.msra.mxu0 0.0
  %928 = vmatprep.subr.mxu0 0.0
  %929 = vmatpush1.msra.mxu0 0.0
  %930 = vmatprep.subr.mxu0 0.0
  %931 = vmatpush1.msra.mxu0 0.0
  %932 = vmatprep.subr.mxu0 0.0
  %933 = vmatpush1.msra.mxu0 0.0
  %934 = vmatprep.subr.mxu0 0.0
  %935 = vmatpush1.msra.mxu0 0.0
  %936 = vmatprep.subr.mxu0 0.0
  %937 = vmatpush1.msra.mxu0 0.0
  %938 = vmatprep.subr.mxu0 0.0
  %939 = vmatpush1.msra.mxu0 0.0
  %940 = vmatprep.subr.mxu0 0.0
  %941 = vmatpush1.msra.mxu0 0.0
  %942 = vmatprep.subr.mxu0 0.0
  %943 = vmatpush1.msra.mxu0 0.0
  %944 = vmatprep.subr.mxu0 0.0
  %945 = vmatpush1.msra.mxu0 0.0
  %946 = vmatprep.subr.mxu0 0.0
  %947 = vmatpush1.msra.mxu0 0.0
  %948 = vmatprep.subr.mxu0 0.0
  %949 = vmatpush1.msra.mxu0 0.0
  %950 = vmatprep.subr.mxu0 0.0
  %951 = vmatpush1.msra.mxu0 %v118
  %952 = vmatprep.subr.mxu0 0.0
  %953 = vmatpush1.msra.mxu0 %v117
  %954 = vmatprep.subr.mxu0 0.0
  %955 = vmatpush1.msra.mxu0 %v116
  %956 = vmatprep.subr.mxu0 0.0
  %957 = vmatpush1.msra.mxu0 %v115
  %958 = vmatprep.subr.mxu0 0.0
  %959 = vmatpush2.msra.mxu0 0.0
  %960 = vmatprep.subr.mxu0 0.0
  %961 = vmatpush2.msra.mxu0 0.0
  %962 = vmatprep.subr.mxu0 0.0
  %963 = vmatpush2.msra.mxu0 0.0
  %964 = vmatprep.subr.mxu0 0.0
  %965 = vmatpush2.msra.mxu0 0.0
  %966 = vmatprep.subr.mxu0 0.0
  %967 = vmatpush2.msra.mxu0 0.0
  %968 = vmatprep.subr.mxu0 0.0
  %969 = vmatpush2.msra.mxu0 0.0
  %970 = vmatprep.subr.mxu0 0.0
  %971 = vmatpush2.msra.mxu0 0.0
  %972 = vmatprep.subr.mxu0 0.0
  %973 = vmatpush2.msra.mxu0 0.0
  %974 = vmatprep.subr.mxu0 0.0
  %975 = vmatpush2.msra.mxu0 0.0
  %976 = vmatprep.subr.mxu0 0.0
  %977 = vmatpush2.msra.mxu0 0.0
  %978 = vmatprep.subr.mxu0 0.0
  %979 = vmatpush2.msra.mxu0 0.0
  %980 = vmatprep.subr.mxu0 0.0
  %981 = vmatpush2.msra.mxu0 0.0
  %982 = vmatprep.subr.mxu0 0.0
  %983 = vmatpush2.msra.mxu0 0.0
  %984 = vmatprep.subr.mxu0 0.0
  %985 = vmatpush2.msra.mxu0 0.0
  %986 = vmatprep.subr.mxu0 0.0
  %987 = vmatpush2.msra.mxu0 0.0
  %988 = vmatprep.subr.mxu0 0.0
  %989 = vmatpush2.msra.mxu0 0.0
  %990 = vmatprep.mubr.f32.mxu0 0.0
  %991 = vmatmul.mubr.f32.gmra.mxu0 %v879
  %v992 = vpop.f32.mrf.mxu0
  %v993 = vadd.f32 0.0, %v992
  %v994 = vpop.f32.mrf.mxu0
  %995 = vmatprep.mubr.f32.mxu0 0.0
  %996 = vmatmul.mubr.f32.gmra.mxu0 %v882
  %v997 = vpop.f32.mrf.mxu0
  %v998 = vadd.f32 0.0, %v997
  %v999 = vpop.f32.mrf.mxu0
  %1000 = vmatprep.mubr.f32.mxu0 0.0
  %1001 = vmatmul.mubr.f32.gmra.mxu0 %v885
  %v1002 = vpop.f32.mrf.mxu0
  %v1003 = vadd.f32 0.0, %v1002
  %v1004 = vpop.f32.mrf.mxu0
  %1005 = vmatprep.mubr.f32.mxu0 0.0
  %1006 = vmatmul.mubr.f32.gmra.mxu0 %v888
  %v1007 = vpop.f32.mrf.mxu0
  %v1008 = vadd.f32 0.0, %v1007
  %v1009 = vpop.f32.mrf.mxu0
  %1010 = vmatprep.mubr.f32.mxu0 0.0
  %1011 = vmatmul.mubr.f32.gmra.mxu0 %v891
  %v1012 = vpop.f32.mrf.mxu0
  %v1013 = vadd.f32 0.0, %v1012
  %v1014 = vpop.f32.mrf.mxu0
  %1015 = vmatprep.mubr.f32.mxu0 0.0
  %1016 = vmatmul.mubr.f32.gmra.mxu0 %v894
  %v1017 = vpop.f32.mrf.mxu0
  %v1018 = vadd.f32 0.0, %v1017
  %v1019 = vpop.f32.mrf.mxu0
  %1020 = vmatprep.mubr.f32.mxu0 0.0
  %1021 = vmatmul.mubr.f32.gmra.mxu0 %v897
  %v1022 = vpop.f32.mrf.mxu0
  %v1023 = vadd.f32 0.0, %v1022
  %v1024 = vpop.f32.mrf.mxu0
  %1025 = vmatprep.mubr.f32.mxu0 0.0
  %1026 = vmatmul.mubr.f32.gmra.mxu0 %v900
  %v1027 = vpop.f32.mrf.mxu0
  %v1028 = vadd.f32 0.0, %v1027
  %v1029 = vpop.f32.mrf.mxu0
  %1030 = vmatprep.mubr.f32.mxu0 0.0
  %1031 = vmatmul.mubr.f32.gmra.mxu0 %v903
  %v1032 = vpop.f32.mrf.mxu0
  %v1033 = vadd.f32 0.0, %v1032
  %v1034 = vpop.f32.mrf.mxu0
  %1035 = vmatprep.mubr.f32.mxu0 0.0
  %1036 = vmatmul.mubr.f32.gmra.mxu0 %v906
  %v1037 = vpop.f32.mrf.mxu0
  %v1038 = vadd.f32 0.0, %v1037
  %v1039 = vpop.f32.mrf.mxu0
  %1040 = vmatprep.mubr.f32.mxu0 0.0
  %1041 = vmatmul.mubr.f32.gmra.mxu0 %v909
  %v1042 = vpop.f32.mrf.mxu0
  %v1043 = vadd.f32 0.0, %v1042
  %v1044 = vpop.f32.mrf.mxu0
  %1045 = vmatprep.mubr.f32.mxu0 0.0
  %1046 = vmatmul.mubr.f32.gmra.mxu0 %v912
  %v1047 = vpop.f32.mrf.mxu0
  %v1048 = vadd.f32 0.0, %v1047
  %v1049 = vpop.f32.mrf.mxu0
  %1050 = vmatprep.mubr.f32.mxu0 0.0
  %1051 = vmatmul.mubr.f32.gmra.mxu0 %v915
  %v1052 = vpop.f32.mrf.mxu0
  %v1053 = vadd.f32 0.0, %v1052
  %v1054 = vpop.f32.mrf.mxu0
  %1055 = vmatprep.mubr.f32.mxu0 0.0
  %1056 = vmatmul.mubr.f32.gmra.mxu0 %v918
  %v1057 = vpop.f32.mrf.mxu0
  %v1058 = vadd.f32 0.0, %v1057
  %v1059 = vpop.f32.mrf.mxu0
  %1060 = vmatprep.mubr.f32.mxu0 0.0
  %1061 = vmatmul.mubr.f32.gmra.mxu0 %v921
  %v1062 = vpop.f32.mrf.mxu0
  %v1063 = vadd.f32 0.0, %v1062
  %v1064 = vpop.f32.mrf.mxu0
  %1065 = vmatprep.mubr.f32.mxu0 0.0
  %1066 = vmatmul.mubr.f32.gmra.mxu0 %v924
  %v1067 = vpop.f32.mrf.mxu0
  %v1068 = vadd.f32 0.0, %v1067
  %v1069 = vpop.f32.mrf.mxu0
  %1070 = vdwg.mxu0
  %v1072 = vsel %vm286, %v800, 0
  %v1075 = vsel %vm286, %v805, 0
  %v1078 = vsel %vm286, %v810, 0
  %v1081 = vsel %vm286, %v815, 0
  %v1084 = vsel %vm286, %v820, 0
  %v1087 = vsel %vm286, %v825, 0
  %v1090 = vsel %vm286, %v830, 0
  %v1093 = vsel %vm286, %v835, 0
  %v1096 = vsel %vm286, %v840, 0
  %v1099 = vsel %vm286, %v845, 0
  %v1102 = vsel %vm286, %v850, 0
  %v1105 = vsel %vm286, %v855, 0
  %v1108 = vsel %vm286, %v860, 0
  %v1111 = vsel %vm286, %v865, 0
  %v1114 = vsel %vm286, %v870, 0
  %v1117 = vsel %vm286, %v875, 0
  %1119 = vmatprep.subr.mxu0 0.0
  %1120 = vmatpush1.msra.mxu0 0.0
  %1121 = vmatprep.subr.mxu0 0.0
  %1122 = vmatpush1.msra.mxu0 0.0
  %1123 = vmatprep.subr.mxu0 0.0
  %1124 = vmatpush1.msra.mxu0 0.0
  %1125 = vmatprep.subr.mxu0 0.0
  %1126 = vmatpush1.msra.mxu0 0.0
  %1127 = vmatprep.subr.mxu0 0.0
  %1128 = vmatpush1.msra.mxu0 0.0
  %1129 = vmatprep.subr.mxu0 0.0
  %1130 = vmatpush1.msra.mxu0 0.0
  %1131 = vmatprep.subr.mxu0 0.0
  %1132 = vmatpush1.msra.mxu0 0.0
  %1133 = vmatprep.subr.mxu0 0.0
  %1134 = vmatpush1.msra.mxu0 0.0
  %1135 = vmatprep.subr.mxu0 0.0
  %1136 = vmatpush1.msra.mxu0 0.0
  %1137 = vmatprep.subr.mxu0 0.0
  %1138 = vmatpush1.msra.mxu0 0.0
  %1139 = vmatprep.subr.mxu0 0.0
  %1140 = vmatpush1.msra.mxu0 0.0
  %1141 = vmatprep.subr.mxu0 0.0
  %1142 = vmatpush1.msra.mxu0 0.0
  %1143 = vmatprep.subr.mxu0 0.0
  %1144 = vmatpush1.msra.mxu0 %v114
  %1145 = vmatprep.subr.mxu0 0.0
  %1146 = vmatpush1.msra.mxu0 %v113
  %1147 = vmatprep.subr.mxu0 0.0
  %1148 = vmatpush1.msra.mxu0 %v112
  %1149 = vmatprep.subr.mxu0 0.0
  %1150 = vmatpush1.msra.mxu0 %v111
  %1151 = vmatprep.subr.mxu0 0.0
  %1152 = vmatpush2.msra.mxu0 0.0
  %1153 = vmatprep.subr.mxu0 0.0
  %1154 = vmatpush2.msra.mxu0 0.0
  %1155 = vmatprep.subr.mxu0 0.0
  %1156 = vmatpush2.msra.mxu0 0.0
  %1157 = vmatprep.subr.mxu0 0.0
  %1158 = vmatpush2.msra.mxu0 0.0
  %1159 = vmatprep.subr.mxu0 0.0
  %1160 = vmatpush2.msra.mxu0 0.0
  %1161 = vmatprep.subr.mxu0 0.0
  %1162 = vmatpush2.msra.mxu0 0.0
  %1163 = vmatprep.subr.mxu0 0.0
  %1164 = vmatpush2.msra.mxu0 0.0
  %1165 = vmatprep.subr.mxu0 0.0
  %1166 = vmatpush2.msra.mxu0 0.0
  %1167 = vmatprep.subr.mxu0 0.0
  %1168 = vmatpush2.msra.mxu0 0.0
  %1169 = vmatprep.subr.mxu0 0.0
  %1170 = vmatpush2.msra.mxu0 0.0
  %1171 = vmatprep.subr.mxu0 0.0
  %1172 = vmatpush2.msra.mxu0 0.0
  %1173 = vmatprep.subr.mxu0 0.0
  %1174 = vmatpush2.msra.mxu0 0.0
  %1175 = vmatprep.subr.mxu0 0.0
  %1176 = vmatpush2.msra.mxu0 0.0
  %1177 = vmatprep.subr.mxu0 0.0
  %1178 = vmatpush2.msra.mxu0 0.0
  %1179 = vmatprep.subr.mxu0 0.0
  %1180 = vmatpush2.msra.mxu0 0.0
  %1181 = vmatprep.subr.mxu0 0.0
  %1182 = vmatpush2.msra.mxu0 0.0
  %1183 = vmatprep.mubr.f32.mxu0 0.0
  %1184 = vmatmul.mubr.f32.gmra.mxu0 %v1072
  %v1185 = vpop.f32.mrf.mxu0
  %v1186 = vadd.f32 %v993, %v1185
  %v1187 = vpop.f32.mrf.mxu0
  %1188 = vmatprep.mubr.f32.mxu0 0.0
  %1189 = vmatmul.mubr.f32.gmra.mxu0 %v1075
  %v1190 = vpop.f32.mrf.mxu0
  %v1191 = vadd.f32 %v998, %v1190
  %v1192 = vpop.f32.mrf.mxu0
  %1193 = vmatprep.mubr.f32.mxu0 0.0
  %1194 = vmatmul.mubr.f32.gmra.mxu0 %v1078
  %v1195 = vpop.f32.mrf.mxu0
  %v1196 = vadd.f32 %v1003, %v1195
  %v1197 = vpop.f32.mrf.mxu0
  %1198 = vmatprep.mubr.f32.mxu0 0.0
  %1199 = vmatmul.mubr.f32.gmra.mxu0 %v1081
  %v1200 = vpop.f32.mrf.mxu0
  %v1201 = vadd.f32 %v1008, %v1200
  %v1202 = vpop.f32.mrf.mxu0
  %1203 = vmatprep.mubr.f32.mxu0 0.0
  %1204 = vmatmul.mubr.f32.gmra.mxu0 %v1084
  %v1205 = vpop.f32.mrf.mxu0
  %v1206 = vadd.f32 %v1013, %v1205
  %v1207 = vpop.f32.mrf.mxu0
  %1208 = vmatprep.mubr.f32.mxu0 0.0
  %1209 = vmatmul.mubr.f32.gmra.mxu0 %v1087
  %v1210 = vpop.f32.mrf.mxu0
  %v1211 = vadd.f32 %v1018, %v1210
  %v1212 = vpop.f32.mrf.mxu0
  %1213 = vmatprep.mubr.f32.mxu0 0.0
  %1214 = vmatmul.mubr.f32.gmra.mxu0 %v1090
  %v1215 = vpop.f32.mrf.mxu0
  %v1216 = vadd.f32 %v1023, %v1215
  %v1217 = vpop.f32.mrf.mxu0
  %1218 = vmatprep.mubr.f32.mxu0 0.0
  %1219 = vmatmul.mubr.f32.gmra.mxu0 %v1093
  %v1220 = vpop.f32.mrf.mxu0
  %v1221 = vadd.f32 %v1028, %v1220
  %v1222 = vpop.f32.mrf.mxu0
  %1223 = vmatprep.mubr.f32.mxu0 0.0
  %1224 = vmatmul.mubr.f32.gmra.mxu0 %v1096
  %v1225 = vpop.f32.mrf.mxu0
  %v1226 = vadd.f32 %v1033, %v1225
  %v1227 = vpop.f32.mrf.mxu0
  %1228 = vmatprep.mubr.f32.mxu0 0.0
  %1229 = vmatmul.mubr.f32.gmra.mxu0 %v1099
  %v1230 = vpop.f32.mrf.mxu0
  %v1231 = vadd.f32 %v1038, %v1230
  %v1232 = vpop.f32.mrf.mxu0
  %1233 = vmatprep.mubr.f32.mxu0 0.0
  %1234 = vmatmul.mubr.f32.gmra.mxu0 %v1102
  %v1235 = vpop.f32.mrf.mxu0
  %v1236 = vadd.f32 %v1043, %v1235
  %v1237 = vpop.f32.mrf.mxu0
  %1238 = vmatprep.mubr.f32.mxu0 0.0
  %1239 = vmatmul.mubr.f32.gmra.mxu0 %v1105
  %v1240 = vpop.f32.mrf.mxu0
  %v1241 = vadd.f32 %v1048, %v1240
  %v1242 = vpop.f32.mrf.mxu0
  %1243 = vmatprep.mubr.f32.mxu0 0.0
  %1244 = vmatmul.mubr.f32.gmra.mxu0 %v1108
  %v1245 = vpop.f32.mrf.mxu0
  %v1246 = vadd.f32 %v1053, %v1245
  %v1247 = vpop.f32.mrf.mxu0
  %1248 = vmatprep.mubr.f32.mxu0 0.0
  %1249 = vmatmul.mubr.f32.gmra.mxu0 %v1111
  %v1250 = vpop.f32.mrf.mxu0
  %v1251 = vadd.f32 %v1058, %v1250
  %v1252 = vpop.f32.mrf.mxu0
  %1253 = vmatprep.mubr.f32.mxu0 0.0
  %1254 = vmatmul.mubr.f32.gmra.mxu0 %v1114
  %v1255 = vpop.f32.mrf.mxu0
  %v1256 = vadd.f32 %v1063, %v1255
  %v1257 = vpop.f32.mrf.mxu0
  %1258 = vmatprep.mubr.f32.mxu0 0.0
  %1259 = vmatmul.mubr.f32.gmra.mxu0 %v1117
  %v1260 = vpop.f32.mrf.mxu0
  %v1261 = vadd.f32 %v1068, %v1260
  %v1262 = vpop.f32.mrf.mxu0
  %1263 = vdwg.mxu0
  %v1265 = vlaneseq
  %v1266 = vshrl.u32 %v1265, 7
  %v1267 = vsub.s32 0, %v1266
  %v1268 = vrot.slane %v119, %v1267
  %v1270 = vmul.f32 %v1186, %v1268
  %v1271 = vmul.f32 %v1191, %v1268
  %v1272 = vmul.f32 %v1196, %v1268
  %v1273 = vmul.f32 %v1201, %v1268
  %v1274 = vmul.f32 %v1206, %v1268
  %v1275 = vmul.f32 %v1211, %v1268
  %v1276 = vmul.f32 %v1216, %v1268
  %v1277 = vmul.f32 %v1221, %v1268
  %v1278 = vmul.f32 %v1226, %v1268
  %v1279 = vmul.f32 %v1231, %v1268
  %v1280 = vmul.f32 %v1236, %v1268
  %v1281 = vmul.f32 %v1241, %v1268
  %v1282 = vmul.f32 %v1246, %v1268
  %v1283 = vmul.f32 %v1251, %v1268
  %v1284 = vmul.f32 %v1256, %v1268
  %v1285 = vmul.f32 %v1261, %v1268
  %v1287 = vlaneseq
  %v1288 = vshrl.u32 %v1287, 7
  %v1289 = vsub.s32 0, %v1288
  %v1290 = vrot.slane %v120, %v1289
  %v1292 = vadd.f32 %v1270, %v1290
  %v1293 = vadd.f32 %v1271, %v1290
  %v1294 = vadd.f32 %v1272, %v1290
  %v1295 = vadd.f32 %v1273, %v1290
  %v1296 = vadd.f32 %v1274, %v1290
  %v1297 = vadd.f32 %v1275, %v1290
  %v1298 = vadd.f32 %v1276, %v1290
  %v1299 = vadd.f32 %v1277, %v1290
  %v1300 = vadd.f32 %v1278, %v1290
  %v1301 = vadd.f32 %v1279, %v1290
  %v1302 = vadd.f32 %v1280, %v1290
  %v1303 = vadd.f32 %v1281, %v1290
  %v1304 = vadd.f32 %v1282, %v1290
  %v1305 = vadd.f32 %v1283, %v1290
  %v1306 = vadd.f32 %v1284, %v1290
  %v1307 = vadd.f32 %v1285, %v1290
  %v1308 = vmax.f32 %v1292, 0.0
  %v1309 = vmax.f32 %v1293, 0.0
  %v1310 = vmax.f32 %v1294, 0.0
  %v1311 = vmax.f32 %v1295, 0.0
  %v1312 = vmax.f32 %v1296, 0.0
  %v1313 = vmax.f32 %v1297, 0.0
  %v1314 = vmax.f32 %v1298, 0.0
  %v1315 = vmax.f32 %v1299, 0.0
  %v1316 = vmax.f32 %v1300, 0.0
  %v1317 = vmax.f32 %v1301, 0.0
  %v1318 = vmax.f32 %v1302, 0.0
  %v1319 = vmax.f32 %v1303, 0.0
  %v1320 = vmax.f32 %v1304, 0.0
  %v1321 = vmax.f32 %v1305, 0.0
  %v1322 = vmax.f32 %v1306, 0.0
  %v1323 = vmax.f32 %v1307, 0.0
  %v1325 = vlaneseq
  %v1326 = vshrl.u32 %v1325, 7
  %v1327 = vsub.s32 0, %v1326
  %v1328 = vrot.slane %v123, %v1327
  %vm1330 = vcmask 130048
  %v1332 = vsel %vm1330, %v85, 0
  %v1335 = vsel %vm1330, %v86, 0
  %v1338 = vsel %vm1330, %v87, 0
  %v1341 = vsel %vm1330, %v88, 0
  %v1344 = vsel %vm1330, %v89, 0
  %v1347 = vsel %vm1330, %v90, 0
  %v1350 = vsel %vm1330, %v91, 0
  %v1353 = vsel %vm1330, %v92, 0
  %v1356 = vsel %vm1330, %v93, 0
  %v1359 = vsel %vm1330, %v94, 0
  %v1362 = vsel %vm1330, %v95, 0
  %v1365 = vsel %vm1330, %v96, 0
  %v1368 = vsel %vm1330, %v97, 0
  %v1371 = vsel %vm1330, %v98, 0
  %v1374 = vsel %vm1330, %v99, 0
  %v1377 = vsel %vm1330, %v100, 0
  %1379 = vmatprep.subr.mxu0 0.0
  %1380 = vmatpush1.msra.mxu0 0.0
  %1381 = vmatprep.subr.mxu0 0.0
  %1382 = vmatpush1.msra.mxu0 0.0
  %1383 = vmatprep.subr.mxu0 0.0
  %1384 = vmatpush1.msra.mxu0 0.0
  %1385 = vmatprep.subr.mxu0 0.0
  %1386 = vmatpush1.msra.mxu0 0.0
  %1387 = vmatprep.subr.mxu0 0.0
  %1388 = vmatpush1.msra.mxu0 0.0
  %1389 = vmatprep.subr.mxu0 0.0
  %1390 = vmatpush1.msra.mxu0 0.0
  %1391 = vmatprep.subr.mxu0 0.0
  %1392 = vmatpush1.msra.mxu0 0.0
  %1393 = vmatprep.subr.mxu0 0.0
  %1394 = vmatpush1.msra.mxu0 0.0
  %1395 = vmatprep.subr.mxu0 0.0
  %1396 = vmatpush1.msra.mxu0 0.0
  %1397 = vmatprep.subr.mxu0 0.0
  %1398 = vmatpush1.msra.mxu0 0.0
  %1399 = vmatprep.subr.mxu0 0.0
  %1400 = vmatpush1.msra.mxu0 0.0
  %1401 = vmatprep.subr.mxu0 0.0
  %1402 = vmatpush1.msra.mxu0 0.0
  %1403 = vmatprep.subr.mxu0 0.0
  %1404 = vmatpush1.msra.mxu0 0.0
  %1405 = vmatprep.subr.mxu0 0.0
  %1406 = vmatpush1.msra.mxu0 0.0
  %1407 = vmatprep.subr.mxu0 0.0
  %1408 = vmatpush1.msra.mxu0 %v122
  %1409 = vmatprep.subr.mxu0 0.0
  %1410 = vmatpush1.msra.mxu0 %v121
  %1411 = vmatprep.subr.mxu0 0.0
  %1412 = vmatpush2.msra.mxu0 0.0
  %1413 = vmatprep.subr.mxu0 0.0
  %1414 = vmatpush2.msra.mxu0 0.0
  %1415 = vmatprep.subr.mxu0 0.0
  %1416 = vmatpush2.msra.mxu0 0.0
  %1417 = vmatprep.subr.mxu0 0.0
  %1418 = vmatpush2.msra.mxu0 0.0
  %1419 = vmatprep.subr.mxu0 0.0
  %1420 = vmatpush2.msra.mxu0 0.0
  %1421 = vmatprep.subr.mxu0 0.0
  %1422 = vmatpush2.msra.mxu0 0.0
  %1423 = vmatprep.subr.mxu0 0.0
  %1424 = vmatpush2.msra.mxu0 0.0
  %1425 = vmatprep.subr.mxu0 0.0
  %1426 = vmatpush2.msra.mxu0 0.0
  %1427 = vmatprep.subr.mxu0 0.0
  %1428 = vmatpush2.msra.mxu0 0.0
  %1429 = vmatprep.subr.mxu0 0.0
  %1430 = vmatpush2.msra.mxu0 0.0
  %1431 = vmatprep.subr.mxu0 0.0
  %1432 = vmatpush2.msra.mxu0 0.0
  %1433 = vmatprep.subr.mxu0 0.0
  %1434 = vmatpush2.msra.mxu0 0.0
  %1435 = vmatprep.subr.mxu0 0.0
  %1436 = vmatpush2.msra.mxu0 0.0
  %1437 = vmatprep.subr.mxu0 0.0
  %1438 = vmatpush2.msra.mxu0 0.0
  %1439 = vmatprep.subr.mxu0 0.0
  %1440 = vmatpush2.msra.mxu0 0.0
  %1441 = vmatprep.subr.mxu0 0.0
  %1442 = vmatpush2.msra.mxu0 0.0
  %1443 = vmatprep.mubr.f32.mxu0 0.0
  %1444 = vmatmul.mubr.f32.gmra.mxu0 %v1332
  %v1445 = vpop.f32.mrf.mxu0
  %v1446 = vadd.f32 %v1328, %v1445
  %v1447 = vpop.f32.mrf.mxu0
  %1448 = vmatprep.mubr.f32.mxu0 0.0
  %1449 = vmatmul.mubr.f32.gmra.mxu0 %v1335
  %v1450 = vpop.f32.mrf.mxu0
  %v1451 = vadd.f32 %v1328, %v1450
  %v1452 = vpop.f32.mrf.mxu0
  %1453 = vmatprep.mubr.f32.mxu0 0.0
  %1454 = vmatmul.mubr.f32.gmra.mxu0 %v1338
  %v1455 = vpop.f32.mrf.mxu0
  %v1456 = vadd.f32 %v1328, %v1455
  %v1457 = vpop.f32.mrf.mxu0
  %1458 = vmatprep.mubr.f32.mxu0 0.0
  %1459 = vmatmul.mubr.f32.gmra.mxu0 %v1341
  %v1460 = vpop.f32.mrf.mxu0
  %v1461 = vadd.f32 %v1328, %v1460
  %v1462 = vpop.f32.mrf.mxu0
  %1463 = vmatprep.mubr.f32.mxu0 0.0
  %1464 = vmatmul.mubr.f32.gmra.mxu0 %v1344
  %v1465 = vpop.f32.mrf.mxu0
  %v1466 = vadd.f32 %v1328, %v1465
  %v1467 = vpop.f32.mrf.mxu0
  %1468 = vmatprep.mubr.f32.mxu0 0.0
  %1469 = vmatmul.mubr.f32.gmra.mxu0 %v1347
  %v1470 = vpop.f32.mrf.mxu0
  %v1471 = vadd.f32 %v1328, %v1470
  %v1472 = vpop.f32.mrf.mxu0
  %1473 = vmatprep.mubr.f32.mxu0 0.0
  %1474 = vmatmul.mubr.f32.gmra.mxu0 %v1350
  %v1475 = vpop.f32.mrf.mxu0
  %v1476 = vadd.f32 %v1328, %v1475
  %v1477 = vpop.f32.mrf.mxu0
  %1478 = vmatprep.mubr.f32.mxu0 0.0
  %1479 = vmatmul.mubr.f32.gmra.mxu0 %v1353
  %v1480 = vpop.f32.mrf.mxu0
  %v1481 = vadd.f32 %v1328, %v1480
  %v1482 = vpop.f32.mrf.mxu0
  %1483 = vmatprep.mubr.f32.mxu0 0.0
  %1484 = vmatmul.mubr.f32.gmra.mxu0 %v1356
  %v1485 = vpop.f32.mrf.mxu0
  %v1486 = vadd.f32 %v1328, %v1485
  %v1487 = vpop.f32.mrf.mxu0
  %1488 = vmatprep.mubr.f32.mxu0 0.0
  %1489 = vmatmul.mubr.f32.gmra.mxu0 %v1359
  %v1490 = vpop.f32.mrf.mxu0
  %v1491 = vadd.f32 %v1328, %v1490
  %v1492 = vpop.f32.mrf.mxu0
  %1493 = vmatprep.mubr.f32.mxu0 0.0
  %1494 = vmatmul.mubr.f32.gmra.mxu0 %v1362
  %v1495 = vpop.f32.mrf.mxu0
  %v1496 = vadd.f32 %v1328, %v1495
  %v1497 = vpop.f32.mrf.mxu0
  %1498 = vmatprep.mubr.f32.mxu0 0.0
  %1499 = vmatmul.mubr.f32.gmra.mxu0 %v1365
  %v1500 = vpop.f32.mrf.mxu0
  %v1501 = vadd.f32 %v1328, %v1500
  %v1502 = vpop.f32.mrf.mxu0
  %1503 = vmatprep.mubr.f32.mxu0 0.0
  %1504 = vmatmul.mubr.f32.gmra.mxu0 %v1368
  %v1505 = vpop.f32.mrf.mxu0
  %v1506 = vadd.f32 %v1328, %v1505
  %v1507 = vpop.f32.mrf.mxu0
  %1508 = vmatprep.mubr.f32.mxu0 0.0
  %1509 = vmatmul.mubr.f32.gmra.mxu0 %v1371
  %v1510 = vpop.f32.mrf.mxu0
  %v1511 = vadd.f32 %v1328, %v1510
  %v1512 = vpop.f32.mrf.mxu0
  %1513 = vmatprep.mubr.f32.mxu0 0.0
  %1514 = vmatmul.mubr.f32.gmra.mxu0 %v1374
  %v1515 = vpop.f32.mrf.mxu0
  %v1516 = vadd.f32 %v1328, %v1515
  %v1517 = vpop.f32.mrf.mxu0
  %1518 = vmatprep.mubr.f32.mxu0 0.0
  %1519 = vmatmul.mubr.f32.gmra.mxu0 %v1377
  %v1520 = vpop.f32.mrf.mxu0
  %v1521 = vadd.f32 %v1328, %v1520
  %v1522 = vpop.f32.mrf.mxu0
  %1523 = vdwg.mxu0
  %1540 = vrot.lane.b32.xlu0 %v1446, 32
  %v1541 = vpop.permute.xlu0 %1540
  %1542 = vrot.lane.b32.xlu0 %v1451, 32
  %v1543 = vpop.permute.xlu0 %1542
  %1544 = vrot.lane.b32.xlu0 %v1456, 32
  %v1545 = vpop.permute.xlu0 %1544
  %1546 = vrot.lane.b32.xlu0 %v1461, 32
  %v1547 = vpop.permute.xlu0 %1546
  %1548 = vrot.lane.b32.xlu0 %v1466, 32
  %v1549 = vpop.permute.xlu0 %1548
  %1550 = vrot.lane.b32.xlu0 %v1471, 32
  %v1551 = vpop.permute.xlu0 %1550
  %1552 = vrot.lane.b32.xlu0 %v1476, 32
  %v1553 = vpop.permute.xlu0 %1552
  %1554 = vrot.lane.b32.xlu0 %v1481, 32
  %v1555 = vpop.permute.xlu0 %1554
  %1556 = vrot.lane.b32.xlu0 %v1486, 32
  %v1557 = vpop.permute.xlu0 %1556
  %1558 = vrot.lane.b32.xlu0 %v1491, 32
  %v1559 = vpop.permute.xlu0 %1558
  %1560 = vrot.lane.b32.xlu0 %v1496, 32
  %v1561 = vpop.permute.xlu0 %1560
  %1562 = vrot.lane.b32.xlu0 %v1501, 32
  %v1563 = vpop.permute.xlu0 %1562
  %1564 = vrot.lane.b32.xlu0 %v1506, 32
  %v1565 = vpop.permute.xlu0 %1564
  %1566 = vrot.lane.b32.xlu0 %v1511, 32
  %v1567 = vpop.permute.xlu0 %1566
  %1568 = vrot.lane.b32.xlu0 %v1516, 32
  %v1569 = vpop.permute.xlu0 %1568
  %1570 = vrot.lane.b32.xlu0 %v1521, 32
  %v1571 = vpop.permute.xlu0 %1570
  %v1588 = vsel %vm286, %v1308, %v1541
  %v1589 = vsel %vm286, %v1309, %v1543
  %v1590 = vsel %vm286, %v1310, %v1545
  %v1591 = vsel %vm286, %v1311, %v1547
  %v1592 = vsel %vm286, %v1312, %v1549
  %v1593 = vsel %vm286, %v1313, %v1551
  %v1594 = vsel %vm286, %v1314, %v1553
  %v1595 = vsel %vm286, %v1315, %v1555
  %v1596 = vsel %vm286, %v1316, %v1557
  %v1597 = vsel %vm286, %v1317, %v1559
  %v1598 = vsel %vm286, %v1318, %v1561
  %v1599 = vsel %vm286, %v1319, %v1563
  %v1600 = vsel %vm286, %v1320, %v1565
  %v1601 = vsel %vm286, %v1321, %v1567
  %v1602 = vsel %vm286, %v1322, %v1569
  %v1603 = vsel %vm286, %v1323, %v1571
  %1604 = vmatprep.subr.mxu0 0.0
  %1605 = vmatpush1.msra.mxu0 %v1603
  %1606 = vmatprep.subr.mxu0 0.0
  %1607 = vmatpush1.msra.mxu0 %v1602
  %1608 = vmatprep.subr.mxu0 0.0
  %1609 = vmatpush1.msra.mxu0 %v1601
  %1610 = vmatprep.subr.mxu0 0.0
  %1611 = vmatpush1.msra.mxu0 %v1600
  %1612 = vmatprep.subr.mxu0 0.0
  %1613 = vmatpush1.msra.mxu0 %v1599
  %1614 = vmatprep.subr.mxu0 0.0
  %1615 = vmatpush1.msra.mxu0 %v1598
  %1616 = vmatprep.subr.mxu0 0.0
  %1617 = vmatpush1.msra.mxu0 %v1597
  %1618 = vmatprep.subr.mxu0 0.0
  %1619 = vmatpush1.msra.mxu0 %v1596
  %1620 = vmatprep.subr.mxu0 0.0
  %1621 = vmatpush1.msra.mxu0 %v1595
  %1622 = vmatprep.subr.mxu0 0.0
  %1623 = vmatpush1.msra.mxu0 %v1594
  %1624 = vmatprep.subr.mxu0 0.0
  %1625 = vmatpush1.msra.mxu0 %v1593
  %1626 = vmatprep.subr.mxu0 0.0
  %1627 = vmatpush1.msra.mxu0 %v1592
  %1628 = vmatprep.subr.mxu0 0.0
  %1629 = vmatpush1.msra.mxu0 %v1591
  %1630 = vmatprep.subr.mxu0 0.0
  %1631 = vmatpush1.msra.mxu0 %v1590
  %1632 = vmatprep.subr.mxu0 0.0
  %1633 = vmatpush1.msra.mxu0 %v1589
  %1634 = vmatprep.subr.mxu0 0.0
  %1635 = vmatpush1.msra.mxu0 %v1588
  %1636 = vmatprep.subr.mxu0 0.0
  %1637 = vmatpush2.msra.mxu0 0.0
  %1638 = vmatprep.subr.mxu0 0.0
  %1639 = vmatpush2.msra.mxu0 0.0
  %1640 = vmatprep.subr.mxu0 0.0
  %1641 = vmatpush2.msra.mxu0 0.0
  %1642 = vmatprep.subr.mxu0 0.0
  %1643 = vmatpush2.msra.mxu0 0.0
  %1644 = vmatprep.subr.mxu0 0.0
  %1645 = vmatpush2.msra.mxu0 0.0
  %1646 = vmatprep.subr.mxu0 0.0
  %1647 = vmatpush2.msra.mxu0 0.0
  %1648 = vmatprep.subr.mxu0 0.0
  %1649 = vmatpush2.msra.mxu0 0.0
  %1650 = vmatprep.subr.mxu0 0.0
  %1651 = vmatpush2.msra.mxu0 0.0
  %1652 = vmatprep.subr.mxu0 0.0
  %1653 = vmatpush2.msra.mxu0 0.0
  %1654 = vmatprep.subr.mxu0 0.0
  %1655 = vmatpush2.msra.mxu0 0.0
  %1656 = vmatprep.subr.mxu0 0.0
  %1657 = vmatpush2.msra.mxu0 0.0
  %1658 = vmatprep.subr.mxu0 0.0
  %1659 = vmatpush2.msra.mxu0 0.0
  %1660 = vmatprep.subr.mxu0 0.0
  %1661 = vmatpush2.msra.mxu0 0.0
  %1662 = vmatprep.subr.mxu0 0.0
  %1663 = vmatpush2.msra.mxu0 0.0
  %1664 = vmatprep.subr.mxu0 0.0
  %1665 = vmatpush2.msra.mxu0 0.0
  %1666 = vmatprep.subr.mxu0 0.0
  %1667 = vmatpush2.msra.mxu0 0.0
  %1668 = vmatprep.mubr.f32.mxu0 0.0
  %1669 = vmatmul.mubr.f32.gmra.mxu0 %v53
  %v1670 = vpop.f32.mrf.mxu0
  %v1671 = vadd.f32 0.0, %v1670
  %v1672 = vpop.f32.mrf.mxu0
  %1673 = vmatprep.mubr.f32.mxu0 0.0
  %1674 = vmatmul.mubr.f32.gmra.mxu0 %v54
  %v1675 = vpop.f32.mrf.mxu0
  %v1676 = vadd.f32 0.0, %v1675
  %v1677 = vpop.f32.mrf.mxu0
  %1678 = vmatprep.mubr.f32.mxu0 0.0
  %1679 = vmatmul.mubr.f32.gmra.mxu0 %v55
  %v1680 = vpop.f32.mrf.mxu0
  %v1681 = vadd.f32 0.0, %v1680
  %v1682 = vpop.f32.mrf.mxu0
  %1683 = vmatprep.mubr.f32.mxu0 0.0
  %1684 = vmatmul.mubr.f32.gmra.mxu0 %v56
  %v1685 = vpop.f32.mrf.mxu0
  %v1686 = vadd.f32 0.0, %v1685
  %v1687 = vpop.f32.mrf.mxu0
  %1688 = vmatprep.mubr.f32.mxu0 0.0
  %1689 = vmatmul.mubr.f32.gmra.mxu0 %v57
  %v1690 = vpop.f32.mrf.mxu0
  %v1691 = vadd.f32 0.0, %v1690
  %v1692 = vpop.f32.mrf.mxu0
  %1693 = vmatprep.mubr.f32.mxu0 0.0
  %1694 = vmatmul.mubr.f32.gmra.mxu0 %v58
  %v1695 = vpop.f32.mrf.mxu0
  %v1696 = vadd.f32 0.0, %v1695
  %v1697 = vpop.f32.mrf.mxu0
  %1698 = vmatprep.mubr.f32.mxu0 0.0
  %1699 = vmatmul.mubr.f32.gmra.mxu0 %v59
  %v1700 = vpop.f32.mrf.mxu0
  %v1701 = vadd.f32 0.0, %v1700
  %v1702 = vpop.f32.mrf.mxu0
  %1703 = vmatprep.mubr.f32.mxu0 0.0
  %1704 = vmatmul.mubr.f32.gmra.mxu0 %v60
  %v1705 = vpop.f32.mrf.mxu0
  %v1706 = vadd.f32 0.0, %v1705
  %v1707 = vpop.f32.mrf.mxu0
  %1708 = vmatprep.mubr.f32.mxu0 0.0
  %1709 = vmatmul.mubr.f32.gmra.mxu0 %v61
  %v1710 = vpop.f32.mrf.mxu0
  %v1711 = vadd.f32 0.0, %v1710
  %v1712 = vpop.f32.mrf.mxu0
  %1713 = vmatprep.mubr.f32.mxu0 0.0
  %1714 = vmatmul.mubr.f32.gmra.mxu0 %v62
  %v1715 = vpop.f32.mrf.mxu0
  %v1716 = vadd.f32 0.0, %v1715
  %v1717 = vpop.f32.mrf.mxu0
  %1718 = vmatprep.mubr.f32.mxu0 0.0
  %1719 = vmatmul.mubr.f32.gmra.mxu0 %v63
  %v1720 = vpop.f32.mrf.mxu0
  %v1721 = vadd.f32 0.0, %v1720
  %v1722 = vpop.f32.mrf.mxu0
  %1723 = vmatprep.mubr.f32.mxu0 0.0
  %1724 = vmatmul.mubr.f32.gmra.mxu0 %v64
  %v1725 = vpop.f32.mrf.mxu0
  %v1726 = vadd.f32 0.0, %v1725
  %v1727 = vpop.f32.mrf.mxu0
  %1728 = vmatprep.mubr.f32.mxu0 0.0
  %1729 = vmatmul.mubr.f32.gmra.mxu0 %v65
  %v1730 = vpop.f32.mrf.mxu0
  %v1731 = vadd.f32 0.0, %v1730
  %v1732 = vpop.f32.mrf.mxu0
  %1733 = vmatprep.mubr.f32.mxu0 0.0
  %1734 = vmatmul.mubr.f32.gmra.mxu0 %v66
  %v1735 = vpop.f32.mrf.mxu0
  %v1736 = vadd.f32 0.0, %v1735
  %v1737 = vpop.f32.mrf.mxu0
  %1738 = vmatprep.mubr.f32.mxu0 0.0
  %1739 = vmatmul.mubr.f32.gmra.mxu0 %v67
  %v1740 = vpop.f32.mrf.mxu0
  %v1741 = vadd.f32 0.0, %v1740
  %v1742 = vpop.f32.mrf.mxu0
  %1743 = vmatprep.mubr.f32.mxu0 0.0
  %1744 = vmatmul.mubr.f32.gmra.mxu0 %v68
  %v1745 = vpop.f32.mrf.mxu0
  %v1746 = vadd.f32 0.0, %v1745
  %v1747 = vpop.f32.mrf.mxu0
  %1748 = vdwg.mxu0
  %vm1749 = vcmask 523264
  %v1751 = vsel %vm1749, %v1588, 0
  %v1754 = vsel %vm1749, %v1589, 0
  %v1757 = vsel %vm1749, %v1590, 0
  %v1760 = vsel %vm1749, %v1591, 0
  %v1763 = vsel %vm1749, %v1592, 0
  %v1766 = vsel %vm1749, %v1593, 0
  %v1769 = vsel %vm1749, %v1594, 0
  %v1772 = vsel %vm1749, %v1595, 0
  %v1775 = vsel %vm1749, %v1596, 0
  %v1778 = vsel %vm1749, %v1597, 0
  %v1781 = vsel %vm1749, %v1598, 0
  %v1784 = vsel %vm1749, %v1599, 0
  %v1787 = vsel %vm1749, %v1600, 0
  %v1790 = vsel %vm1749, %v1601, 0
  %v1793 = vsel %vm1749, %v1602, 0
  %v1796 = vsel %vm1749, %v1603, 0
  %1798 = vmatprep.subr.mxu0 0.0
  %1799 = vmatpush1.msra.mxu0 0.0
  %1800 = vmatprep.subr.mxu0 0.0
  %1801 = vmatpush1.msra.mxu0 0.0
  %1802 = vmatprep.subr.mxu0 0.0
  %1803 = vmatpush1.msra.mxu0 0.0
  %1804 = vmatprep.subr.mxu0 0.0
  %1805 = vmatpush1.msra.mxu0 0.0
  %1806 = vmatprep.subr.mxu0 0.0
  %1807 = vmatpush1.msra.mxu0 0.0
  %1808 = vmatprep.subr.mxu0 0.0
  %1809 = vmatpush1.msra.mxu0 0.0
  %1810 = vmatprep.subr.mxu0 0.0
  %1811 = vmatpush1.msra.mxu0 0.0
  %1812 = vmatprep.subr.mxu0 0.0
  %1813 = vmatpush1.msra.mxu0 0.0
  %1814 = vmatprep.subr.mxu0 0.0
  %1815 = vmatpush1.msra.mxu0 %v139
  %1816 = vmatprep.subr.mxu0 0.0
  %1817 = vmatpush1.msra.mxu0 %v138
  %1818 = vmatprep.subr.mxu0 0.0
  %1819 = vmatpush1.msra.mxu0 %v137
  %1820 = vmatprep.subr.mxu0 0.0
  %1821 = vmatpush1.msra.mxu0 %v136
  %1822 = vmatprep.subr.mxu0 0.0
  %1823 = vmatpush1.msra.mxu0 %v135
  %1824 = vmatprep.subr.mxu0 0.0
  %1825 = vmatpush1.msra.mxu0 %v134
  %1826 = vmatprep.subr.mxu0 0.0
  %1827 = vmatpush1.msra.mxu0 %v133
  %1828 = vmatprep.subr.mxu0 0.0
  %1829 = vmatpush1.msra.mxu0 %v132
  %1830 = vmatprep.subr.mxu0 0.0
  %1831 = vmatpush2.msra.mxu0 0.0
  %1832 = vmatprep.subr.mxu0 0.0
  %1833 = vmatpush2.msra.mxu0 0.0
  %1834 = vmatprep.subr.mxu0 0.0
  %1835 = vmatpush2.msra.mxu0 0.0
  %1836 = vmatprep.subr.mxu0 0.0
  %1837 = vmatpush2.msra.mxu0 0.0
  %1838 = vmatprep.subr.mxu0 0.0
  %1839 = vmatpush2.msra.mxu0 0.0
  %1840 = vmatprep.subr.mxu0 0.0
  %1841 = vmatpush2.msra.mxu0 0.0
  %1842 = vmatprep.subr.mxu0 0.0
  %1843 = vmatpush2.msra.mxu0 0.0
  %1844 = vmatprep.subr.mxu0 0.0
  %1845 = vmatpush2.msra.mxu0 0.0
  %1846 = vmatprep.subr.mxu0 0.0
  %1847 = vmatpush2.msra.mxu0 0.0
  %1848 = vmatprep.subr.mxu0 0.0
  %1849 = vmatpush2.msra.mxu0 0.0
  %1850 = vmatprep.subr.mxu0 0.0
  %1851 = vmatpush2.msra.mxu0 0.0
  %1852 = vmatprep.subr.mxu0 0.0
  %1853 = vmatpush2.msra.mxu0 0.0
  %1854 = vmatprep.subr.mxu0 0.0
  %1855 = vmatpush2.msra.mxu0 0.0
  %1856 = vmatprep.subr.mxu0 0.0
  %1857 = vmatpush2.msra.mxu0 0.0
  %1858 = vmatprep.subr.mxu0 0.0
  %1859 = vmatpush2.msra.mxu0 0.0
  %1860 = vmatprep.subr.mxu0 0.0
  %1861 = vmatpush2.msra.mxu0 0.0
  %1862 = vmatprep.mubr.f32.mxu0 0.0
  %1863 = vmatmul.mubr.f32.gmra.mxu0 %v1751
  %v1864 = vpop.f32.mrf.mxu0
  %v1865 = vadd.f32 0.0, %v1864
  %v1866 = vpop.f32.mrf.mxu0
  %1867 = vmatprep.mubr.f32.mxu0 0.0
  %1868 = vmatmul.mubr.f32.gmra.mxu0 %v1754
  %v1869 = vpop.f32.mrf.mxu0
  %v1870 = vadd.f32 0.0, %v1869
  %v1871 = vpop.f32.mrf.mxu0
  %1872 = vmatprep.mubr.f32.mxu0 0.0
  %1873 = vmatmul.mubr.f32.gmra.mxu0 %v1757
  %v1874 = vpop.f32.mrf.mxu0
  %v1875 = vadd.f32 0.0, %v1874
  %v1876 = vpop.f32.mrf.mxu0
  %1877 = vmatprep.mubr.f32.mxu0 0.0
  %1878 = vmatmul.mubr.f32.gmra.mxu0 %v1760
  %v1879 = vpop.f32.mrf.mxu0
  %v1880 = vadd.f32 0.0, %v1879
  %v1881 = vpop.f32.mrf.mxu0
  %1882 = vmatprep.mubr.f32.mxu0 0.0
  %1883 = vmatmul.mubr.f32.gmra.mxu0 %v1763
  %v1884 = vpop.f32.mrf.mxu0
  %v1885 = vadd.f32 0.0, %v1884
  %v1886 = vpop.f32.mrf.mxu0
  %1887 = vmatprep.mubr.f32.mxu0 0.0
  %1888 = vmatmul.mubr.f32.gmra.mxu0 %v1766
  %v1889 = vpop.f32.mrf.mxu0
  %v1890 = vadd.f32 0.0, %v1889
  %v1891 = vpop.f32.mrf.mxu0
  %1892 = vmatprep.mubr.f32.mxu0 0.0
  %1893 = vmatmul.mubr.f32.gmra.mxu0 %v1769
  %v1894 = vpop.f32.mrf.mxu0
  %v1895 = vadd.f32 0.0, %v1894
  %v1896 = vpop.f32.mrf.mxu0
  %1897 = vmatprep.mubr.f32.mxu0 0.0
  %1898 = vmatmul.mubr.f32.gmra.mxu0 %v1772
  %v1899 = vpop.f32.mrf.mxu0
  %v1900 = vadd.f32 0.0, %v1899
  %v1901 = vpop.f32.mrf.mxu0
  %1902 = vmatprep.mubr.f32.mxu0 0.0
  %1903 = vmatmul.mubr.f32.gmra.mxu0 %v1775
  %v1904 = vpop.f32.mrf.mxu0
  %v1905 = vadd.f32 0.0, %v1904
  %v1906 = vpop.f32.mrf.mxu0
  %1907 = vmatprep.mubr.f32.mxu0 0.0
  %1908 = vmatmul.mubr.f32.gmra.mxu0 %v1778
  %v1909 = vpop.f32.mrf.mxu0
  %v1910 = vadd.f32 0.0, %v1909
  %v1911 = vpop.f32.mrf.mxu0
  %1912 = vmatprep.mubr.f32.mxu0 0.0
  %1913 = vmatmul.mubr.f32.gmra.mxu0 %v1781
  %v1914 = vpop.f32.mrf.mxu0
  %v1915 = vadd.f32 0.0, %v1914
  %v1916 = vpop.f32.mrf.mxu0
  %1917 = vmatprep.mubr.f32.mxu0 0.0
  %1918 = vmatmul.mubr.f32.gmra.mxu0 %v1784
  %v1919 = vpop.f32.mrf.mxu0
  %v1920 = vadd.f32 0.0, %v1919
  %v1921 = vpop.f32.mrf.mxu0
  %1922 = vmatprep.mubr.f32.mxu0 0.0
  %1923 = vmatmul.mubr.f32.gmra.mxu0 %v1787
  %v1924 = vpop.f32.mrf.mxu0
  %v1925 = vadd.f32 0.0, %v1924
  %v1926 = vpop.f32.mrf.mxu0
  %1927 = vmatprep.mubr.f32.mxu0 0.0
  %1928 = vmatmul.mubr.f32.gmra.mxu0 %v1790
  %v1929 = vpop.f32.mrf.mxu0
  %v1930 = vadd.f32 0.0, %v1929
  %v1931 = vpop.f32.mrf.mxu0
  %1932 = vmatprep.mubr.f32.mxu0 0.0
  %1933 = vmatmul.mubr.f32.gmra.mxu0 %v1793
  %v1934 = vpop.f32.mrf.mxu0
  %v1935 = vadd.f32 0.0, %v1934
  %v1936 = vpop.f32.mrf.mxu0
  %1937 = vmatprep.mubr.f32.mxu0 0.0
  %1938 = vmatmul.mubr.f32.gmra.mxu0 %v1796
  %v1939 = vpop.f32.mrf.mxu0
  %v1940 = vadd.f32 0.0, %v1939
  %v1941 = vpop.f32.mrf.mxu0
  %1942 = vdwg.mxu0
  %v1944 = vsel %vm1749, %v1671, 0
  %v1947 = vsel %vm1749, %v1676, 0
  %v1950 = vsel %vm1749, %v1681, 0
  %v1953 = vsel %vm1749, %v1686, 0
  %v1956 = vsel %vm1749, %v1691, 0
  %v1959 = vsel %vm1749, %v1696, 0
  %v1962 = vsel %vm1749, %v1701, 0
  %v1965 = vsel %vm1749, %v1706, 0
  %v1968 = vsel %vm1749, %v1711, 0
  %v1971 = vsel %vm1749, %v1716, 0
  %v1974 = vsel %vm1749, %v1721, 0
  %v1977 = vsel %vm1749, %v1726, 0
  %v1980 = vsel %vm1749, %v1731, 0
  %v1983 = vsel %vm1749, %v1736, 0
  %v1986 = vsel %vm1749, %v1741, 0
  %v1989 = vsel %vm1749, %v1746, 0
  %1991 = vmatprep.subr.mxu0 0.0
  %1992 = vmatpush1.msra.mxu0 0.0
  %1993 = vmatprep.subr.mxu0 0.0
  %1994 = vmatpush1.msra.mxu0 0.0
  %1995 = vmatprep.subr.mxu0 0.0
  %1996 = vmatpush1.msra.mxu0 0.0
  %1997 = vmatprep.subr.mxu0 0.0
  %1998 = vmatpush1.msra.mxu0 0.0
  %1999 = vmatprep.subr.mxu0 0.0
  %2000 = vmatpush1.msra.mxu0 0.0
  %2001 = vmatprep.subr.mxu0 0.0
  %2002 = vmatpush1.msra.mxu0 0.0
  %2003 = vmatprep.subr.mxu0 0.0
  %2004 = vmatpush1.msra.mxu0 0.0
  %2005 = vmatprep.subr.mxu0 0.0
  %2006 = vmatpush1.msra.mxu0 0.0
  %2007 = vmatprep.subr.mxu0 0.0
  %2008 = vmatpush1.msra.mxu0 %v131
  %2009 = vmatprep.subr.mxu0 0.0
  %2010 = vmatpush1.msra.mxu0 %v130
  %2011 = vmatprep.subr.mxu0 0.0
  %2012 = vmatpush1.msra.mxu0 %v129
  %2013 = vmatprep.subr.mxu0 0.0
  %2014 = vmatpush1.msra.mxu0 %v128
  %2015 = vmatprep.subr.mxu0 0.0
  %2016 = vmatpush1.msra.mxu0 %v127
  %2017 = vmatprep.subr.mxu0 0.0
  %2018 = vmatpush1.msra.mxu0 %v126
  %2019 = vmatprep.subr.mxu0 0.0
  %2020 = vmatpush1.msra.mxu0 %v125
  %2021 = vmatprep.subr.mxu0 0.0
  %2022 = vmatpush1.msra.mxu0 %v124
  %2023 = vmatprep.subr.mxu0 0.0
  %2024 = vmatpush2.msra.mxu0 0.0
  %2025 = vmatprep.subr.mxu0 0.0
  %2026 = vmatpush2.msra.mxu0 0.0
  %2027 = vmatprep.subr.mxu0 0.0
  %2028 = vmatpush2.msra.mxu0 0.0
  %2029 = vmatprep.subr.mxu0 0.0
  %2030 = vmatpush2.msra.mxu0 0.0
  %2031 = vmatprep.subr.mxu0 0.0
  %2032 = vmatpush2.msra.mxu0 0.0
  %2033 = vmatprep.subr.mxu0 0.0
  %2034 = vmatpush2.msra.mxu0 0.0
  %2035 = vmatprep.subr.mxu0 0.0
  %2036 = vmatpush2.msra.mxu0 0.0
  %2037 = vmatprep.subr.mxu0 0.0
  %2038 = vmatpush2.msra.mxu0 0.0
  %2039 = vmatprep.subr.mxu0 0.0
  %2040 = vmatpush2.msra.mxu0 0.0
  %2041 = vmatprep.subr.mxu0 0.0
  %2042 = vmatpush2.msra.mxu0 0.0
  %2043 = vmatprep.subr.mxu0 0.0
  %2044 = vmatpush2.msra.mxu0 0.0
  %2045 = vmatprep.subr.mxu0 0.0
  %2046 = vmatpush2.msra.mxu0 0.0
  %2047 = vmatprep.subr.mxu0 0.0
  %2048 = vmatpush2.msra.mxu0 0.0
  %2049 = vmatprep.subr.mxu0 0.0
  %2050 = vmatpush2.msra.mxu0 0.0
  %2051 = vmatprep.subr.mxu0 0.0
  %2052 = vmatpush2.msra.mxu0 0.0
  %2053 = vmatprep.subr.mxu0 0.0
  %2054 = vmatpush2.msra.mxu0 0.0
  %2055 = vmatprep.mubr.f32.mxu0 0.0
  %2056 = vmatmul.mubr.f32.gmra.mxu0 %v1944
  %v2057 = vpop.f32.mrf.mxu0
  %v2058 = vadd.f32 %v1865, %v2057
  %v2059 = vpop.f32.mrf.mxu0
  %2060 = vmatprep.mubr.f32.mxu0 0.0
  %2061 = vmatmul.mubr.f32.gmra.mxu0 %v1947
  %v2062 = vpop.f32.mrf.mxu0
  %v2063 = vadd.f32 %v1870, %v2062
  %v2064 = vpop.f32.mrf.mxu0
  %2065 = vmatprep.mubr.f32.mxu0 0.0
  %2066 = vmatmul.mubr.f32.gmra.mxu0 %v1950
  %v2067 = vpop.f32.mrf.mxu0
  %v2068 = vadd.f32 %v1875, %v2067
  %v2069 = vpop.f32.mrf.mxu0
  %2070 = vmatprep.mubr.f32.mxu0 0.0
  %2071 = vmatmul.mubr.f32.gmra.mxu0 %v1953
  %v2072 = vpop.f32.mrf.mxu0
  %v2073 = vadd.f32 %v1880, %v2072
  %v2074 = vpop.f32.mrf.mxu0
  %2075 = vmatprep.mubr.f32.mxu0 0.0
  %2076 = vmatmul.mubr.f32.gmra.mxu0 %v1956
  %v2077 = vpop.f32.mrf.mxu0
  %v2078 = vadd.f32 %v1885, %v2077
  %v2079 = vpop.f32.mrf.mxu0
  %2080 = vmatprep.mubr.f32.mxu0 0.0
  %2081 = vmatmul.mubr.f32.gmra.mxu0 %v1959
  %v2082 = vpop.f32.mrf.mxu0
  %v2083 = vadd.f32 %v1890, %v2082
  %v2084 = vpop.f32.mrf.mxu0
  %2085 = vmatprep.mubr.f32.mxu0 0.0
  %2086 = vmatmul.mubr.f32.gmra.mxu0 %v1962
  %v2087 = vpop.f32.mrf.mxu0
  %v2088 = vadd.f32 %v1895, %v2087
  %v2089 = vpop.f32.mrf.mxu0
  %2090 = vmatprep.mubr.f32.mxu0 0.0
  %2091 = vmatmul.mubr.f32.gmra.mxu0 %v1965
  %v2092 = vpop.f32.mrf.mxu0
  %v2093 = vadd.f32 %v1900, %v2092
  %v2094 = vpop.f32.mrf.mxu0
  %2095 = vmatprep.mubr.f32.mxu0 0.0
  %2096 = vmatmul.mubr.f32.gmra.mxu0 %v1968
  %v2097 = vpop.f32.mrf.mxu0
  %v2098 = vadd.f32 %v1905, %v2097
  %v2099 = vpop.f32.mrf.mxu0
  %2100 = vmatprep.mubr.f32.mxu0 0.0
  %2101 = vmatmul.mubr.f32.gmra.mxu0 %v1971
  %v2102 = vpop.f32.mrf.mxu0
  %v2103 = vadd.f32 %v1910, %v2102
  %v2104 = vpop.f32.mrf.mxu0
  %2105 = vmatprep.mubr.f32.mxu0 0.0
  %2106 = vmatmul.mubr.f32.gmra.mxu0 %v1974
  %v2107 = vpop.f32.mrf.mxu0
  %v2108 = vadd.f32 %v1915, %v2107
  %v2109 = vpop.f32.mrf.mxu0
  %2110 = vmatprep.mubr.f32.mxu0 0.0
  %2111 = vmatmul.mubr.f32.gmra.mxu0 %v1977
  %v2112 = vpop.f32.mrf.mxu0
  %v2113 = vadd.f32 %v1920, %v2112
  %v2114 = vpop.f32.mrf.mxu0
  %2115 = vmatprep.mubr.f32.mxu0 0.0
  %2116 = vmatmul.mubr.f32.gmra.mxu0 %v1980
  %v2117 = vpop.f32.mrf.mxu0
  %v2118 = vadd.f32 %v1925, %v2117
  %v2119 = vpop.f32.mrf.mxu0
  %2120 = vmatprep.mubr.f32.mxu0 0.0
  %2121 = vmatmul.mubr.f32.gmra.mxu0 %v1983
  %v2122 = vpop.f32.mrf.mxu0
  %v2123 = vadd.f32 %v1930, %v2122
  %v2124 = vpop.f32.mrf.mxu0
  %2125 = vmatprep.mubr.f32.mxu0 0.0
  %2126 = vmatmul.mubr.f32.gmra.mxu0 %v1986
  %v2127 = vpop.f32.mrf.mxu0
  %v2128 = vadd.f32 %v1935, %v2127
  %v2129 = vpop.f32.mrf.mxu0
  %2130 = vmatprep.mubr.f32.mxu0 0.0
  %2131 = vmatmul.mubr.f32.gmra.mxu0 %v1989
  %v2132 = vpop.f32.mrf.mxu0
  %v2133 = vadd.f32 %v1940, %v2132
  %v2134 = vpop.f32.mrf.mxu0
  %2135 = vdwg.mxu0
  %v2137 = vlaneseq
  %v2138 = vshrl.u32 %v2137, 7
  %v2139 = vsub.s32 0, %v2138
  %v2140 = vrot.slane %v140, %v2139
  %v2142 = vadd.f32 %v2058, %v2140
  %v2143 = vadd.f32 %v2063, %v2140
  %v2144 = vadd.f32 %v2068, %v2140
  %v2145 = vadd.f32 %v2073, %v2140
  %v2146 = vadd.f32 %v2078, %v2140
  %v2147 = vadd.f32 %v2083, %v2140
  %v2148 = vadd.f32 %v2088, %v2140
  %v2149 = vadd.f32 %v2093, %v2140
  %v2150 = vadd.f32 %v2098, %v2140
  %v2151 = vadd.f32 %v2103, %v2140
  %v2152 = vadd.f32 %v2108, %v2140
  %v2153 = vadd.f32 %v2113, %v2140
  %v2154 = vadd.f32 %v2118, %v2140
  %v2155 = vadd.f32 %v2123, %v2140
  %v2156 = vadd.f32 %v2128, %v2140
  %v2157 = vadd.f32 %v2133, %v2140
  %vm2158 = vcmask 64512
  %v2159 = vsel %vm2158, %v2142, -inf
  %2160 = vmax.xlane.f32.xlu0 %v2159
  %v2161 = vpop.xlane.xlu0 %2160
  %v2162 = vsel %vm2158, %v2143, -inf
  %2163 = vmax.xlane.f32.xlu0 %v2162
  %v2164 = vpop.xlane.xlu0 %2163
  %v2165 = vsel %vm2158, %v2144, -inf
  %2166 = vmax.xlane.f32.xlu0 %v2165
  %v2167 = vpop.xlane.xlu0 %2166
  %v2168 = vsel %vm2158, %v2145, -inf
  %2169 = vmax.xlane.f32.xlu0 %v2168
  %v2170 = vpop.xlane.xlu0 %2169
  %v2171 = vsel %vm2158, %v2146, -inf
  %2172 = vmax.xlane.f32.xlu0 %v2171
  %v2173 = vpop.xlane.xlu0 %2172
  %v2174 = vsel %vm2158, %v2147, -inf
  %2175 = vmax.xlane.f32.xlu0 %v2174
  %v2176 = vpop.xlane.xlu0 %2175
  %v2177 = vsel %vm2158, %v2148, -inf
  %2178 = vmax.xlane.f32.xlu0 %v2177
  %v2179 = vpop.xlane.xlu0 %2178
  %v2180 = vsel %vm2158, %v2149, -inf
  %2181 = vmax.xlane.f32.xlu0 %v2180
  %v2182 = vpop.xlane.xlu0 %2181
  %v2183 = vsel %vm2158, %v2150, -inf
  %2184 = vmax.xlane.f32.xlu0 %v2183
  %v2185 = vpop.xlane.xlu0 %2184
  %v2186 = vsel %vm2158, %v2151, -inf
  %2187 = vmax.xlane.f32.xlu0 %v2186
  %v2188 = vpop.xlane.xlu0 %2187
  %v2189 = vsel %vm2158, %v2152, -inf
  %2190 = vmax.xlane.f32.xlu0 %v2189
  %v2191 = vpop.xlane.xlu0 %2190
  %v2192 = vsel %vm2158, %v2153, -inf
  %2193 = vmax.xlane.f32.xlu0 %v2192
  %v2194 = vpop.xlane.xlu0 %2193
  %v2195 = vsel %vm2158, %v2154, -inf
  %2196 = vmax.xlane.f32.xlu0 %v2195
  %v2197 = vpop.xlane.xlu0 %2196
  %v2198 = vsel %vm2158, %v2155, -inf
  %2199 = vmax.xlane.f32.xlu0 %v2198
  %v2200 = vpop.xlane.xlu0 %2199
  %v2201 = vsel %vm2158, %v2156, -inf
  %2202 = vmax.xlane.f32.xlu0 %v2201
  %v2203 = vpop.xlane.xlu0 %2202
  %v2204 = vsel %vm2158, %v2157, -inf
  %2205 = vmax.xlane.f32.xlu0 %v2204
  %v2206 = vpop.xlane.xlu0 %2205
  %v2207 = vsub.f32 %v2142, %v2161
  %v2208 = vsub.f32 %v2143, %v2164
  %v2209 = vsub.f32 %v2144, %v2167
  %v2210 = vsub.f32 %v2145, %v2170
  %v2211 = vsub.f32 %v2146, %v2173
  %v2212 = vsub.f32 %v2147, %v2176
  %v2213 = vsub.f32 %v2148, %v2179
  %v2214 = vsub.f32 %v2149, %v2182
  %v2215 = vsub.f32 %v2150, %v2185
  %v2216 = vsub.f32 %v2151, %v2188
  %v2217 = vsub.f32 %v2152, %v2191
  %v2218 = vsub.f32 %v2153, %v2194
  %v2219 = vsub.f32 %v2154, %v2197
  %v2220 = vsub.f32 %v2155, %v2200
  %v2221 = vsub.f32 %v2156, %v2203
  %v2222 = vsub.f32 %v2157, %v2206
  %v2223 = vmul.f32 %v2207, 1.442695
  %v2224 = vpow.pop %v2223
  %v2225 = vmul.f32 %v2208, 1.442695
  %v2226 = vpow.pop %v2225
  %v2227 = vmul.f32 %v2209, 1.442695
  %v2228 = vpow.pop %v2227
  %v2229 = vmul.f32 %v2210, 1.442695
  %v2230 = vpow.pop %v2229
  %v2231 = vmul.f32 %v2211, 1.442695
  %v2232 = vpow.pop %v2231
  %v2233 = vmul.f32 %v2212, 1.442695
  %v2234 = vpow.pop %v2233
  %v2235 = vmul.f32 %v2213, 1.442695
  %v2236 = vpow.pop %v2235
  %v2237 = vmul.f32 %v2214, 1.442695
  %v2238 = vpow.pop %v2237
  %v2239 = vmul.f32 %v2215, 1.442695
  %v2240 = vpow.pop %v2239
  %v2241 = vmul.f32 %v2216, 1.442695
  %v2242 = vpow.pop %v2241
  %v2243 = vmul.f32 %v2217, 1.442695
  %v2244 = vpow.pop %v2243
  %v2245 = vmul.f32 %v2218, 1.442695
  %v2246 = vpow.pop %v2245
  %v2247 = vmul.f32 %v2219, 1.442695
  %v2248 = vpow.pop %v2247
  %v2249 = vmul.f32 %v2220, 1.442695
  %v2250 = vpow.pop %v2249
  %v2251 = vmul.f32 %v2221, 1.442695
  %v2252 = vpow.pop %v2251
  %v2253 = vmul.f32 %v2222, 1.442695
  %v2254 = vpow.pop %v2253
  %v2255 = vsel %vm2158, %v2224, 0.0
  %2256 = vadd.xlane.f32.xlu0 %v2255
  %v2257 = vpop.xlane.xlu0 %2256
  %v2258 = vsel %vm2158, %v2226, 0.0
  %2259 = vadd.xlane.f32.xlu0 %v2258
  %v2260 = vpop.xlane.xlu0 %2259
  %v2261 = vsel %vm2158, %v2228, 0.0
  %2262 = vadd.xlane.f32.xlu0 %v2261
  %v2263 = vpop.xlane.xlu0 %2262
  %v2264 = vsel %vm2158, %v2230, 0.0
  %2265 = vadd.xlane.f32.xlu0 %v2264
  %v2266 = vpop.xlane.xlu0 %2265
  %v2267 = vsel %vm2158, %v2232, 0.0
  %2268 = vadd.xlane.f32.xlu0 %v2267
  %v2269 = vpop.xlane.xlu0 %2268
  %v2270 = vsel %vm2158, %v2234, 0.0
  %2271 = vadd.xlane.f32.xlu0 %v2270
  %v2272 = vpop.xlane.xlu0 %2271
  %v2273 = vsel %vm2158, %v2236, 0.0
  %2274 = vadd.xlane.f32.xlu0 %v2273
  %v2275 = vpop.xlane.xlu0 %2274
  %v2276 = vsel %vm2158, %v2238, 0.0
  %2277 = vadd.xlane.f32.xlu0 %v2276
  %v2278 = vpop.xlane.xlu0 %2277
  %v2279 = vsel %vm2158, %v2240, 0.0
  %2280 = vadd.xlane.f32.xlu0 %v2279
  %v2281 = vpop.xlane.xlu0 %2280
  %v2282 = vsel %vm2158, %v2242, 0.0
  %2283 = vadd.xlane.f32.xlu0 %v2282
  %v2284 = vpop.xlane.xlu0 %2283
  %v2285 = vsel %vm2158, %v2244, 0.0
  %2286 = vadd.xlane.f32.xlu0 %v2285
  %v2287 = vpop.xlane.xlu0 %2286
  %v2288 = vsel %vm2158, %v2246, 0.0
  %2289 = vadd.xlane.f32.xlu0 %v2288
  %v2290 = vpop.xlane.xlu0 %2289
  %v2291 = vsel %vm2158, %v2248, 0.0
  %2292 = vadd.xlane.f32.xlu0 %v2291
  %v2293 = vpop.xlane.xlu0 %2292
  %v2294 = vsel %vm2158, %v2250, 0.0
  %2295 = vadd.xlane.f32.xlu0 %v2294
  %v2296 = vpop.xlane.xlu0 %2295
  %v2297 = vsel %vm2158, %v2252, 0.0
  %2298 = vadd.xlane.f32.xlu0 %v2297
  %v2299 = vpop.xlane.xlu0 %2298
  %v2300 = vsel %vm2158, %v2254, 0.0
  %2301 = vadd.xlane.f32.xlu0 %v2300
  %v2302 = vpop.xlane.xlu0 %2301
  %v2303 = vlog2.pop %v2257
  %v2304 = vmul.f32 %v2303, 0.6931472
  %v2305 = vlog2.pop %v2260
  %v2306 = vmul.f32 %v2305, 0.6931472
  %v2307 = vlog2.pop %v2263
  %v2308 = vmul.f32 %v2307, 0.6931472
  %v2309 = vlog2.pop %v2266
  %v2310 = vmul.f32 %v2309, 0.6931472
  %v2311 = vlog2.pop %v2269
  %v2312 = vmul.f32 %v2311, 0.6931472
  %v2313 = vlog2.pop %v2272
  %v2314 = vmul.f32 %v2313, 0.6931472
  %v2315 = vlog2.pop %v2275
  %v2316 = vmul.f32 %v2315, 0.6931472
  %v2317 = vlog2.pop %v2278
  %v2318 = vmul.f32 %v2317, 0.6931472
  %v2319 = vlog2.pop %v2281
  %v2320 = vmul.f32 %v2319, 0.6931472
  %v2321 = vlog2.pop %v2284
  %v2322 = vmul.f32 %v2321, 0.6931472
  %v2323 = vlog2.pop %v2287
  %v2324 = vmul.f32 %v2323, 0.6931472
  %v2325 = vlog2.pop %v2290
  %v2326 = vmul.f32 %v2325, 0.6931472
  %v2327 = vlog2.pop %v2293
  %v2328 = vmul.f32 %v2327, 0.6931472
  %v2329 = vlog2.pop %v2296
  %v2330 = vmul.f32 %v2329, 0.6931472
  %v2331 = vlog2.pop %v2299
  %v2332 = vmul.f32 %v2331, 0.6931472
  %v2333 = vlog2.pop %v2302
  %v2334 = vmul.f32 %v2333, 0.6931472
  %v2335 = vsub.f32 %v2207, %v2304
  %v2336 = vsub.f32 %v2208, %v2306
  %v2337 = vsub.f32 %v2209, %v2308
  %v2338 = vsub.f32 %v2210, %v2310
  %v2339 = vsub.f32 %v2211, %v2312
  %v2340 = vsub.f32 %v2212, %v2314
  %v2341 = vsub.f32 %v2213, %v2316
  %v2342 = vsub.f32 %v2214, %v2318
  %v2343 = vsub.f32 %v2215, %v2320
  %v2344 = vsub.f32 %v2216, %v2322
  %v2345 = vsub.f32 %v2217, %v2324
  %v2346 = vsub.f32 %v2218, %v2326
  %v2347 = vsub.f32 %v2219, %v2328
  %v2348 = vsub.f32 %v2220, %v2330
  %v2349 = vsub.f32 %v2221, %v2332
  %v2350 = vsub.f32 %v2222, %v2334
  %2351 = vst.msk [vmem:[%s16] sm:$0xff] %vm2158, %v2335
  %2352 = vst.msk [vmem:[%s16 + $0x8] sm:$0xff] %vm2158, %v2336
  %2353 = vst.msk [vmem:[%s16 + $0x10] sm:$0xff] %vm2158, %v2337
  %2354 = vst.msk [vmem:[%s16 + $0x18] sm:$0xff] %vm2158, %v2338
  %2355 = vst.msk [vmem:[%s16 + $0x20] sm:$0xff] %vm2158, %v2339
  %2356 = vst.msk [vmem:[%s16 + $0x28] sm:$0xff] %vm2158, %v2340
  %2357 = vst.msk [vmem:[%s16 + $0x30] sm:$0xff] %vm2158, %v2341
  %2358 = vst.msk [vmem:[%s16 + $0x38] sm:$0xff] %vm2158, %v2342
  %2359 = vst.msk [vmem:[%s16 + $0x40] sm:$0xff] %vm2158, %v2343
  %2360 = vst.msk [vmem:[%s16 + $0x48] sm:$0xff] %vm2158, %v2344
  %2361 = vst.msk [vmem:[%s16 + $0x50] sm:$0xff] %vm2158, %v2345
  %2362 = vst.msk [vmem:[%s16 + $0x58] sm:$0xff] %vm2158, %v2346
  %2363 = vst.msk [vmem:[%s16 + $0x60] sm:$0xff] %vm2158, %v2347
  %2364 = vst.msk [vmem:[%s16 + $0x68] sm:$0xff] %vm2158, %v2348
  %2365 = vst.msk [vmem:[%s16 + $0x70] sm:$0xff] %vm2158, %v2349
  %2366 = vst.msk [vmem:[%s16 + $0x78] sm:$0xff] %vm2158, %v2350
  // Predicated region
  $region66: #{sage_w_feat_forward.1} parent=0 // pred_check
    _
  $region67: #{sage_w_feat_forward.1} parent=0 // pred_check_branch
    %2368 = sbr.rel (0) target = $region69
  $region68: #{sage_w_feat_forward.1} parent=0 // pred_region
    _
  $region69: #{sage_w_feat_forward.1} parent=0 // pred_fallthru
    _
  // Predicated region
  $region70: #{sage_w_feat_forward.1} parent=0 // pred_check
    _
  $region71: #{sage_w_feat_forward.1} parent=0 // pred_check_branch
    %2370 = sbr.rel (0) target = $region73
  $region72: #{sage_w_feat_forward.1} parent=0 // pred_region
    _
  $region73: #{sage_w_feat_forward.1} parent=0 // pred_fallthru
    _

</llo_original>
